<compile_context>
chip_gen: v6e
topology: v6e:2x2x1
jax: 0.10.0
libtpu: 0.0.40
codegen_flags: <defaults>
</compile_context>

<pallas_src>
import jax
import jax.numpy as jnp
from jax import lax
from jax.experimental import pallas as pl
from jax.experimental.pallas import tpu as pltpu

# ---- logical (module-config) sizes -------------------------------------------
N = 8            # number of nodes (multiple of 8 -> sublane aligned)
IN_DIM = 32      # input feature dim
HID = 32         # encoder / predictor hidden dim
CODE_DIM = 32    # config.codebook_dim
CODE_SIZE = 16   # config.codebook_size
COMMIT_W = 1.0   # config.commitment_weight

# ---- lane-padded sizes (all last dims padded to the 128-lane vreg width) ------
LANE = 128
IN_P = LANE
HID_P = LANE
CODE_P = LANE

# NOTE: operands stay f32 here (exactness at toy sizes; v5e has no bf16 VPU
# path).  For scaled-up N on v6e/v7x, cast matmul operands to bf16 (keep
# preferred_element_type=f32) and tile rows with a 'parallel' grid axis.


def _vmem():
    return pl.BlockSpec(memory_space=pltpu.MemorySpace.VMEM)


def _mlp(x, w1, b1, w2, b2):
    h = jnp.dot(x, w1, preferred_element_type=jnp.float32) + b1
    h = jnp.maximum(h, 0.0)                                   # ReLU
    return jnp.dot(h, w2, preferred_element_type=jnp.float32) + b2


def _vq_quantize(x, cb):
    """Nearest-codebook lookup (euclidean). Returns quantized vectors [N, D]."""
    n, d = x.shape
    k = cb.shape[0]
    # argmin_k ||x - c_k||^2 == argmin_k (|c_k|^2 - 2 x.c_k); |x|^2 is constant
    # per row and dropped.  Codebook norms computed directly in [1, K] layout
    # (MXU contraction with a ones-row) -- no XLU transpose of a [K, 1] column.
    c2 = lax.dot_general(jnp.ones((1, d), jnp.float32), cb * cb,
                         (((1,), (1,)), ((), ())),
                         preferred_element_type=jnp.float32)           # [1, K]
    xc = lax.dot_general(x, cb, (((1,), (1,)), ((), ())),
                         preferred_element_type=jnp.float32)           # [N, K]
    score = c2 - 2.0 * xc                                              # [N, K]
    min_s = jnp.min(score, axis=1, keepdims=True)                      # [N, 1]
    col = lax.broadcasted_iota(jnp.int32, (n, k), 1)
    # first index attaining the minimum (matches torch argmin tie-breaking)
    idx = jnp.min(jnp.where(score <= min_s, col, k), axis=1, keepdims=True)
    onehot = (col == idx).astype(jnp.float32)                          # [N, K]
    # gather via one-hot matmul on the MXU
    return jnp.dot(onehot, cb, preferred_element_type=jnp.float32)     # [N, D]


# ---- fused BGRL forward kernel -------------------------------------------------
def bgrl_kernel(
    ox_ref, tx_ref,                       # node features [N, IN_P]
    oe_w1, oe_b1, oe_w2, oe_b2,           # online encoder
    te_w1, te_b1, te_w2, te_b2,           # target encoder
    pr_w1, pr_b1, pr_w2, pr_b2,           # predictor
    cb_ref,                               # codebook [CODE_SIZE, CODE_P]
    online_q_ref, quant_tgt_ref, loss_ref,
):
    cb = cb_ref[...]

    # --- online branch: encoder -> VQ -> predictor (+ commitment loss) --------
    online_y = _mlp(ox_ref[...], oe_w1[...], oe_b1[...], oe_w2[...], oe_b2[...])
    quant_online = _vq_quantize(online_y, cb)
    diff = online_y - quant_online            # padded lanes are exactly zero
    # F.mse_loss(quantize, x) * commitment_weight  (mean over real N*CODE_DIM)
    loss_ref[0] = jnp.sum(diff * diff) * (COMMIT_W / float(N * CODE_DIM))
    online_q_ref[...] = _mlp(quant_online, pr_w1[...], pr_b1[...],
                             pr_w2[...], pr_b2[...])

    # --- target branch: encoder -> VQ (no loss, no indices) -------------------
    target_y = _mlp(tx_ref[...], te_w1[...], te_b1[...], te_w2[...], te_b2[...])
    quant_tgt_ref[...] = _vq_quantize(target_y, cb)


def bgrl_forward(params, online_x, target_x):
    # pad input features to the 128-lane axis (zeros are exact no-ops)
    ox = jnp.pad(online_x, ((0, 0), (0, IN_P - IN_DIM)))
    tx = jnp.pad(target_x, ((0, 0), (0, IN_P - IN_DIM)))

    online_q, quant_tgt, loss = pl.pallas_call(
        bgrl_kernel,
        out_shape=(
            jax.ShapeDtypeStruct((N, CODE_P), jnp.float32),   # online_q (padded)
            jax.ShapeDtypeStruct((N, CODE_P), jnp.float32),   # quant_target (padded)
            jax.ShapeDtypeStruct((1,), jnp.float32),          # commit loss (SMEM)
        ),
        in_specs=[_vmem()] * 15,
        out_specs=(
            _vmem(),
            _vmem(),
            pl.BlockSpec(memory_space=pltpu.MemorySpace.SMEM),
        ),
    )(
        ox, tx,
        *params["online_encoder"],
        *params["target_encoder"],
        *params["predictor"],
        params["codebook"],
    )

    # slice back to logical codebook_dim; target branch is detached (no-grad)
    online_q = online_q[:, :CODE_DIM]
    quant_tgt = lax.stop_gradient(quant_tgt[:, :CODE_DIM])
    # TODO(synk): straight-through estimator (q = x + sg(q - x)) and detaching q
    # in the commitment loss matter only for gradients; forward values identical.
    return online_q, quant_tgt, loss[0]


# ---- deterministic parameter init (pre-padded to lane width) -------------------
def _pad2(a, rows, cols):
    return jnp.pad(a, ((0, rows - a.shape[0]), (0, cols - a.shape[1])))


def init_mlp(key, din, dh, dout, din_p, dh_p, dout_p, scale=0.1):
    k1, k2 = jax.random.split(key)
    w1 = _pad2(scale * jax.random.normal(k1, (din, dh), jnp.float32), din_p, dh_p)
    b1 = jnp.zeros((1, dh_p), jnp.float32)
    w2 = _pad2(scale * jax.random.normal(k2, (dh, dout), jnp.float32), dh_p, dout_p)
    b2 = jnp.zeros((1, dout_p), jnp.float32)
    return (w1, b1, w2, b2)


def init_params(key):
    k_enc, k_tgt, k_pred, k_cb = jax.random.split(key, 4)
    codebook = jax.random.normal(k_cb, (CODE_SIZE, CODE_DIM), jnp.float32)
    return {
        "online_encoder": init_mlp(k_enc, IN_DIM, HID, CODE_DIM, IN_P, HID_P, CODE_P),
        # target_encoder.reset_parameters() -> independently initialized weights
        "target_encoder": init_mlp(k_tgt, IN_DIM, HID, CODE_DIM, IN_P, HID_P, CODE_P),
        "predictor": init_mlp(k_pred, CODE_DIM, HID, CODE_DIM, CODE_P, HID_P, CODE_P),
        # TODO(synk): kmeans_init / EMA-decay codebook updates are training-time
        # state mutations, not part of the forward compute; codebook is static here.
        "codebook": _pad2(codebook, CODE_SIZE, CODE_P),
    }


if __name__ == "__main__":
    key = jax.random.PRNGKey(0)
    k_params, k_x1, k_x2 = jax.random.split(key, 3)
    params = init_params(k_params)
    online_x = jax.random.normal(k_x1, (N, IN_DIM), jnp.float32)
    target_x = jax.random.normal(k_x2, (N, IN_DIM), jnp.float32)

    online_q, quant_target, commit_loss = jax.jit(bgrl_forward)(
        params, online_x, target_x
    )
    jax.block_until_ready((online_q, quant_target, commit_loss))

    assert online_q.shape == (N, CODE_DIM)
    assert quant_target.shape == (N, CODE_DIM)
    assert commit_loss.shape == ()
    print("KERNEL_OK")
</pallas_src>

<mosaic_0001>
module attributes {stable_mosaic.version = 11 : i64} {
  func.func @bgrl_kernel(%arg0: memref<8x128xf32, #tpu.memory_space<vmem>>, %arg1: memref<8x128xf32, #tpu.memory_space<vmem>>, %arg2: memref<128x128xf32, #tpu.memory_space<vmem>>, %arg3: memref<1x128xf32, #tpu.memory_space<vmem>>, %arg4: memref<128x128xf32, #tpu.memory_space<vmem>>, %arg5: memref<1x128xf32, #tpu.memory_space<vmem>>, %arg6: memref<128x128xf32, #tpu.memory_space<vmem>>, %arg7: memref<1x128xf32, #tpu.memory_space<vmem>>, %arg8: memref<128x128xf32, #tpu.memory_space<vmem>>, %arg9: memref<1x128xf32, #tpu.memory_space<vmem>>, %arg10: memref<128x128xf32, #tpu.memory_space<vmem>>, %arg11: memref<1x128xf32, #tpu.memory_space<vmem>>, %arg12: memref<128x128xf32, #tpu.memory_space<vmem>>, %arg13: memref<1x128xf32, #tpu.memory_space<vmem>>, %arg14: memref<16x128xf32, #tpu.memory_space<vmem>>, %arg15: memref<8x128xf32, #tpu.memory_space<vmem>>, %arg16: memref<8x128xf32, #tpu.memory_space<vmem>>, %arg17: memref<1xf32, #tpu.memory_space<smem>>) attributes {dimension_semantics = [], scalar_prefetch = 0 : i64, scratch_operands = 0 : i64, tpu.core_type = #tpu.core_type<tc>} {
    %c0 = arith.constant 0 : index
    %c0_0 = arith.constant 0 : index
    %0 = vector.load %arg14[%c0, %c0_0] : memref<16x128xf32, #tpu.memory_space<vmem>>, vector<16x128xf32>
    %c0_1 = arith.constant 0 : index
    %c0_2 = arith.constant 0 : index
    %1 = vector.load %arg0[%c0_1, %c0_2] : memref<8x128xf32, #tpu.memory_space<vmem>>, vector<8x128xf32>
    %c0_3 = arith.constant 0 : index
    %c0_4 = arith.constant 0 : index
    %2 = vector.load %arg2[%c0_3, %c0_4] : memref<128x128xf32, #tpu.memory_space<vmem>>, vector<128x128xf32>
    %c0_5 = arith.constant 0 : index
    %c0_6 = arith.constant 0 : index
    %3 = vector.load %arg3[%c0_5, %c0_6] : memref<1x128xf32, #tpu.memory_space<vmem>>, vector<1x128xf32>
    %c0_7 = arith.constant 0 : index
    %c0_8 = arith.constant 0 : index
    %4 = vector.load %arg4[%c0_7, %c0_8] : memref<128x128xf32, #tpu.memory_space<vmem>>, vector<128x128xf32>
    %c0_9 = arith.constant 0 : index
    %c0_10 = arith.constant 0 : index
    %5 = vector.load %arg5[%c0_9, %c0_10] : memref<1x128xf32, #tpu.memory_space<vmem>>, vector<1x128xf32>
    %cst = arith.constant dense<0.000000e+00> : vector<8x128xf32>
    %6 = tpu.matmul %1, %2, %cst {dimension_numbers = #tpu.dot_dimension_numbers<[1], [0], [0], [1], [0, 0, 1, 1], [], []>} : vector<8x128xf32>, vector<128x128xf32>, vector<8x128xf32> -> vector<8x128xf32>
    %7 = vector.broadcast %3 : vector<1x128xf32> to vector<8x128xf32>
    %8 = arith.addf %6, %7 : vector<8x128xf32>
    %cst_11 = arith.constant 0.000000e+00 : f32
    %9 = vector.broadcast %cst_11 : f32 to vector<8x128xf32>
    %10 = arith.maximumf %8, %9 : vector<8x128xf32>
    %cst_12 = arith.constant dense<0.000000e+00> : vector<8x128xf32>
    %11 = tpu.matmul %10, %4, %cst_12 {dimension_numbers = #tpu.dot_dimension_numbers<[1], [0], [0], [1], [0, 0, 1, 1], [], []>} : vector<8x128xf32>, vector<128x128xf32>, vector<8x128xf32> -> vector<8x128xf32>
    %12 = vector.broadcast %5 : vector<1x128xf32> to vector<8x128xf32>
    %13 = arith.addf %11, %12 : vector<8x128xf32>
    %cst_13 = arith.constant 1.000000e+00 : f32
    %14 = vector.broadcast %cst_13 : f32 to vector<1x128xf32>
    %15 = arith.mulf %0, %0 : vector<16x128xf32>
    %cst_14 = arith.constant dense<0.000000e+00> : vector<1x16xf32>
    %16 = tpu.matmul %14, %15, %cst_14 {dimension_numbers = #tpu.dot_dimension_numbers<[1], [1], [0], [0], [0, 0, 1, 0], [], []>} : vector<1x128xf32>, vector<16x128xf32>, vector<1x16xf32> -> vector<1x16xf32>
    %cst_15 = arith.constant dense<0.000000e+00> : vector<8x16xf32>
    %17 = tpu.matmul %13, %0, %cst_15 {dimension_numbers = #tpu.dot_dimension_numbers<[1], [1], [0], [0], [0, 0, 1, 0], [], []>} : vector<8x128xf32>, vector<16x128xf32>, vector<8x16xf32> -> vector<8x16xf32>
    %cst_16 = arith.constant 2.000000e+00 : f32
    %18 = vector.broadcast %cst_16 : f32 to vector<8x16xf32>
    %19 = arith.mulf %18, %17 : vector<8x16xf32>
    %20 = vector.broadcast %16 : vector<1x16xf32> to vector<8x16xf32>
    %21 = arith.subf %20, %19 : vector<8x16xf32>
    %cst_17 = arith.constant dense<0x7F800000> : vector<8xf32>
    %22 = vector.multi_reduction <minimumf>, %21, %cst_17 [1] : vector<8x16xf32> to vector<8xf32>
    %23 = vector.shape_cast %22 : vector<8xf32> to vector<8x1xf32>
    %24 = tpu.iota {dimensions = array<i32: 1>} : vector<8x16xi32>
    %25 = vector.broadcast %23 : vector<8x1xf32> to vector<8x16xf32>
    %26 = arith.cmpf ole, %21, %25 : vector<8x16xf32>
    %c16_i32 = arith.constant 16 : i32
    %27 = vector.broadcast %c16_i32 : i32 to vector<8x16xi32>
    %28 = arith.select %26, %24, %27 : vector<8x16xi1>, vector<8x16xi32>
    %cst_18 = arith.constant dense<2147483647> : vector<8xi32>
    %29 = vector.multi_reduction <minsi>, %28, %cst_18 [1] : vector<8x16xi32> to vector<8xi32>
    %30 = vector.shape_cast %29 : vector<8xi32> to vector<8x1xi32>
    %31 = vector.broadcast %30 : vector<8x1xi32> to vector<8x16xi32>
    %32 = arith.cmpi eq, %24, %31 : vector<8x16xi32>
    %33 = arith.extui %32 : vector<8x16xi1> to vector<8x16xi32>
    %34 = arith.sitofp %33 : vector<8x16xi32> to vector<8x16xf32>
    %cst_19 = arith.constant dense<0.000000e+00> : vector<8x128xf32>
    %35 = tpu.matmul %34, %0, %cst_19 {dimension_numbers = #tpu.dot_dimension_numbers<[1], [0], [0], [1], [0, 0, 1, 1], [], []>} : vector<8x16xf32>, vector<16x128xf32>, vector<8x128xf32> -> vector<8x128xf32>
    %36 = arith.subf %13, %35 : vector<8x128xf32>
    %37 = arith.mulf %36, %36 : vector<8x128xf32>
    %38 = vector.shape_cast %37 : vector<8x128xf32> to vector<1x8x128xf32>
    %cst_20 = arith.constant dense<0.000000e+00> : vector<1xf32>
    %39 = vector.multi_reduction <add>, %38, %cst_20 [1, 2] : vector<1x8x128xf32> to vector<1xf32>
    %40 = vector.shape_cast %39 : vector<1xf32> to vector<1x1x1xf32>
    %41 = vector.extract %40[0, 0, 0] : f32 from vector<1x1x1xf32>
    %cst_21 = arith.constant 3.906250e-03 : f32
    %42 = arith.mulf %41, %cst_21 : f32
    %c0_22 = arith.constant 0 : index
    %43 = memref.load %arg17[%c0_22] : memref<1xf32, #tpu.memory_space<smem>>
    memref.store %42, %arg17[%c0_22] : memref<1xf32, #tpu.memory_space<smem>>
    %c0_23 = arith.constant 0 : index
    %c0_24 = arith.constant 0 : index
    %44 = vector.load %arg10[%c0_23, %c0_24] : memref<128x128xf32, #tpu.memory_space<vmem>>, vector<128x128xf32>
    %c0_25 = arith.constant 0 : index
    %c0_26 = arith.constant 0 : index
    %45 = vector.load %arg11[%c0_25, %c0_26] : memref<1x128xf32, #tpu.memory_space<vmem>>, vector<1x128xf32>
    %c0_27 = arith.constant 0 : index
    %c0_28 = arith.constant 0 : index
    %46 = vector.load %arg12[%c0_27, %c0_28] : memref<128x128xf32, #tpu.memory_space<vmem>>, vector<128x128xf32>
    %c0_29 = arith.constant 0 : index
    %c0_30 = arith.constant 0 : index
    %47 = vector.load %arg13[%c0_29, %c0_30] : memref<1x128xf32, #tpu.memory_space<vmem>>, vector<1x128xf32>
    %cst_31 = arith.constant dense<0.000000e+00> : vector<8x128xf32>
    %48 = tpu.matmul %35, %44, %cst_31 {dimension_numbers = #tpu.dot_dimension_numbers<[1], [0], [0], [1], [0, 0, 1, 1], [], []>} : vector<8x128xf32>, vector<128x128xf32>, vector<8x128xf32> -> vector<8x128xf32>
    %49 = vector.broadcast %45 : vector<1x128xf32> to vector<8x128xf32>
    %50 = arith.addf %48, %49 : vector<8x128xf32>
    %cst_32 = arith.constant 0.000000e+00 : f32
    %51 = vector.broadcast %cst_32 : f32 to vector<8x128xf32>
    %52 = arith.maximumf %50, %51 : vector<8x128xf32>
    %cst_33 = arith.constant dense<0.000000e+00> : vector<8x128xf32>
    %53 = tpu.matmul %52, %46, %cst_33 {dimension_numbers = #tpu.dot_dimension_numbers<[1], [0], [0], [1], [0, 0, 1, 1], [], []>} : vector<8x128xf32>, vector<128x128xf32>, vector<8x128xf32> -> vector<8x128xf32>
    %54 = vector.broadcast %47 : vector<1x128xf32> to vector<8x128xf32>
    %55 = arith.addf %53, %54 : vector<8x128xf32>
    %c0_34 = arith.constant 0 : index
    %c0_35 = arith.constant 0 : index
    %56 = vector.load %arg15[%c0_34, %c0_35] : memref<8x128xf32, #tpu.memory_space<vmem>>, vector<8x128xf32>
    tpu.vector_store %arg15[%c0_34, %c0_35], %55 {strides = array<i32>} : memref<8x128xf32, #tpu.memory_space<vmem>>, vector<8x128xf32>,
    %c0_36 = arith.constant 0 : index
    %c0_37 = arith.constant 0 : index
    %57 = vector.load %arg1[%c0_36, %c0_37] : memref<8x128xf32, #tpu.memory_space<vmem>>, vector<8x128xf32>
    %c0_38 = arith.constant 0 : index
    %c0_39 = arith.constant 0 : index
    %58 = vector.load %arg6[%c0_38, %c0_39] : memref<128x128xf32, #tpu.memory_space<vmem>>, vector<128x128xf32>
    %c0_40 = arith.constant 0 : index
    %c0_41 = arith.constant 0 : index
    %59 = vector.load %arg7[%c0_40, %c0_41] : memref<1x128xf32, #tpu.memory_space<vmem>>, vector<1x128xf32>
    %c0_42 = arith.constant 0 : index
    %c0_43 = arith.constant 0 : index
    %60 = vector.load %arg8[%c0_42, %c0_43] : memref<128x128xf32, #tpu.memory_space<vmem>>, vector<128x128xf32>
    %c0_44 = arith.constant 0 : index
    %c0_45 = arith.constant 0 : index
    %61 = vector.load %arg9[%c0_44, %c0_45] : memref<1x128xf32, #tpu.memory_space<vmem>>, vector<1x128xf32>
    %cst_46 = arith.constant dense<0.000000e+00> : vector<8x128xf32>
    %62 = tpu.matmul %57, %58, %cst_46 {dimension_numbers = #tpu.dot_dimension_numbers<[1], [0], [0], [1], [0, 0, 1, 1], [], []>} : vector<8x128xf32>, vector<128x128xf32>, vector<8x128xf32> -> vector<8x128xf32>
    %63 = vector.broadcast %59 : vector<1x128xf32> to vector<8x128xf32>
    %64 = arith.addf %62, %63 : vector<8x128xf32>
    %cst_47 = arith.constant 0.000000e+00 : f32
    %65 = vector.broadcast %cst_47 : f32 to vector<8x128xf32>
    %66 = arith.maximumf %64, %65 : vector<8x128xf32>
    %cst_48 = arith.constant dense<0.000000e+00> : vector<8x128xf32>
    %67 = tpu.matmul %66, %60, %cst_48 {dimension_numbers = #tpu.dot_dimension_numbers<[1], [0], [0], [1], [0, 0, 1, 1], [], []>} : vector<8x128xf32>, vector<128x128xf32>, vector<8x128xf32> -> vector<8x128xf32>
    %68 = vector.broadcast %61 : vector<1x128xf32> to vector<8x128xf32>
    %69 = arith.addf %67, %68 : vector<8x128xf32>
    %cst_49 = arith.constant 1.000000e+00 : f32
    %70 = vector.broadcast %cst_49 : f32 to vector<1x128xf32>
    %71 = arith.mulf %0, %0 : vector<16x128xf32>
    %cst_50 = arith.constant dense<0.000000e+00> : vector<1x16xf32>
    %72 = tpu.matmul %70, %71, %cst_50 {dimension_numbers = #tpu.dot_dimension_numbers<[1], [1], [0], [0], [0, 0, 1, 0], [], []>} : vector<1x128xf32>, vector<16x128xf32>, vector<1x16xf32> -> vector<1x16xf32>
    %cst_51 = arith.constant dense<0.000000e+00> : vector<8x16xf32>
    %73 = tpu.matmul %69, %0, %cst_51 {dimension_numbers = #tpu.dot_dimension_numbers<[1], [1], [0], [0], [0, 0, 1, 0], [], []>} : vector<8x128xf32>, vector<16x128xf32>, vector<8x16xf32> -> vector<8x16xf32>
    %cst_52 = arith.constant 2.000000e+00 : f32
    %74 = vector.broadcast %cst_52 : f32 to vector<8x16xf32>
    %75 = arith.mulf %74, %73 : vector<8x16xf32>
    %76 = vector.broadcast %72 : vector<1x16xf32> to vector<8x16xf32>
    %77 = arith.subf %76, %75 : vector<8x16xf32>
    %cst_53 = arith.constant dense<0x7F800000> : vector<8xf32>
    %78 = vector.multi_reduction <minimumf>, %77, %cst_53 [1] : vector<8x16xf32> to vector<8xf32>
    %79 = vector.shape_cast %78 : vector<8xf32> to vector<8x1xf32>
    %80 = tpu.iota {dimensions = array<i32: 1>} : vector<8x16xi32>
    %81 = vector.broadcast %79 : vector<8x1xf32> to vector<8x16xf32>
    %82 = arith.cmpf ole, %77, %81 : vector<8x16xf32>
    %c16_i32_54 = arith.constant 16 : i32
    %83 = vector.broadcast %c16_i32_54 : i32 to vector<8x16xi32>
    %84 = arith.select %82, %80, %83 : vector<8x16xi1>, vector<8x16xi32>
    %cst_55 = arith.constant dense<2147483647> : vector<8xi32>
    %85 = vector.multi_reduction <minsi>, %84, %cst_55 [1] : vector<8x16xi32> to vector<8xi32>
    %86 = vector.shape_cast %85 : vector<8xi32> to vector<8x1xi32>
    %87 = vector.broadcast %86 : vector<8x1xi32> to vector<8x16xi32>
    %88 = arith.cmpi eq, %80, %87 : vector<8x16xi32>
    %89 = arith.extui %88 : vector<8x16xi1> to vector<8x16xi32>
    %90 = arith.sitofp %89 : vector<8x16xi32> to vector<8x16xf32>
    %cst_56 = arith.constant dense<0.000000e+00> : vector<8x128xf32>
    %91 = tpu.matmul %90, %0, %cst_56 {dimension_numbers = #tpu.dot_dimension_numbers<[1], [0], [0], [1], [0, 0, 1, 1], [], []>} : vector<8x16xf32>, vector<16x128xf32>, vector<8x128xf32> -> vector<8x128xf32>
    %c0_57 = arith.constant 0 : index
    %c0_58 = arith.constant 0 : index
    %92 = vector.load %arg16[%c0_57, %c0_58] : memref<8x128xf32, #tpu.memory_space<vmem>>, vector<8x128xf32>
    tpu.vector_store %arg16[%c0_57, %c0_58], %91 {strides = array<i32>} : memref<8x128xf32, #tpu.memory_space<vmem>>, vector<8x128xf32>,
    return
  }
}

</mosaic_0001>

<llo_original>
// kernel: bgrl_forward.1
$region0: #{bgrl_forward.1}
  #allocation0 [shape = 'u32[]', space=smem, size = 0x4, offset = 0x4, fixed_abs, tag = 'smem constant byte address 0x4 - core index']
  #allocation1 [shape = 'u32[144,128]{1,0:T(1,128)}', space=vmem, size = 0x12000, scoped, tag = 'internal scratch']
  %s0 = inlined_call_operand.vmem [shape: f32[8,128], index: 0, kind: input, shape index: {}]
  %s1 = inlined_call_operand.vmem [shape: f32[8,128], index: 1, kind: input, shape index: {}]
  %s2 = inlined_call_operand.hbm [shape: f32[128,128], index: 2, kind: input, shape index: {}]
  %s3 = inlined_call_operand.vmem [shape: f32[1,128], index: 3, kind: input, shape index: {}]
  %s4 = inlined_call_operand.hbm [shape: f32[128,128], index: 4, kind: input, shape index: {}]
  %s5 = inlined_call_operand.vmem [shape: f32[1,128], index: 5, kind: input, shape index: {}]
  %s6 = inlined_call_operand.hbm [shape: f32[128,128], index: 6, kind: input, shape index: {}]
  %s7 = inlined_call_operand.vmem [shape: f32[1,128], index: 7, kind: input, shape index: {}]
  %s8 = inlined_call_operand.hbm [shape: f32[128,128], index: 8, kind: input, shape index: {}]
  %s9 = inlined_call_operand.vmem [shape: f32[1,128], index: 9, kind: input, shape index: {}]
  %s10 = inlined_call_operand.hbm [shape: f32[128,128], index: 10, kind: input, shape index: {}]
  %s11 = inlined_call_operand.vmem [shape: f32[1,128], index: 11, kind: input, shape index: {}]
  %s12 = inlined_call_operand.hbm [shape: f32[128,128], index: 12, kind: input, shape index: {}]
  %s13 = inlined_call_operand.vmem [shape: f32[1,128], index: 13, kind: input, shape index: {}]
  %s14 = inlined_call_operand.vmem [shape: f32[16,128], index: 14, kind: input, shape index: {}]
  %s15 = inlined_call_operand.hbm [shape: f32[8,128], index: 15, kind: output, shape index: {0}]
  %s16 = inlined_call_operand.hbm [shape: f32[8,128], index: 16, kind: output, shape index: {1}]
  %s17 = inlined_call_operand.hbm [shape: f32[1], index: 17, kind: output, shape index: {2}]
  %18 = xla_tuple %s15, %s16, %s17
  %s19 = sld [smem:[#allocation0]]
  $region110: #{bgrl_forward.1} parent=0
    _
  %s21 = ssub.s32 1, %s19
  %s22 = scalar_select 0, %s21, %s19
  $region1: #{bgrl_forward.1} parent=0
    #allocation2 [shape = 'u8[65536]{0}', space=vmem, size = 0x10000, scoped, tag = 'input window, operand 2, single buffered']
    #allocation3 [shape = 's32[1]{0}', space=sflag, size = 0x4, scoped, tag = 'scoped memory for bgrl_forward.1']
    #allocation4 [shape = 's32[1]{0}', space=sflag, size = 0x4, scoped, tag = 'scoped memory for bgrl_forward.1']
    #allocation5 [shape = 's32[1]{0}', space=sflag, size = 0x4, scoped, tag = 'scoped memory for bgrl_forward.1']
    #allocation6 [shape = 'u8[65536]{0}', space=vmem, size = 0x10000, scoped, tag = 'input window, operand 4, single buffered']
    #allocation7 [shape = 's32[1]{0}', space=sflag, size = 0x4, scoped, tag = 'scoped memory for bgrl_forward.1']
    #allocation8 [shape = 'u8[65536]{0}', space=vmem, size = 0x10000, scoped, tag = 'input window, operand 6, single buffered']
    #allocation9 [shape = 'u8[65536]{0}', space=vmem, size = 0x10000, scoped, tag = 'input window, operand 8, single buffered']
    #allocation10 [shape = 's32[1]{0}', space=sflag, size = 0x4, scoped, tag = 'scoped memory for bgrl_forward.1']
    #allocation11 [shape = 'u8[65536]{0}', space=vmem, size = 0x10000, scoped, tag = 'input window, operand 10, single buffered']
    #allocation12 [shape = 'u8[65536]{0}', space=vmem, size = 0x10000, scoped, tag = 'input window, operand 12, single buffered']
    #allocation13 [shape = 's32[1]{0}', space=sflag, size = 0x4, scoped, tag = 'scoped memory for bgrl_forward.1']
    #allocation14 [shape = 'u8[4096]{0}', space=vmem, size = 0x1000, scoped, tag = 'output window, operand 0, single buffered']
    #allocation15 [shape = 'u8[4096]{0}', space=vmem, size = 0x1000, scoped, tag = 'output window, operand 1, single buffered']
    #allocation16 [shape = 's32[1]{0}', space=sflag, size = 0x4, scoped, tag = 'scoped memory for bgrl_forward.1']
    #allocation17 [shape = 'u8[512]{0}', space=smem, size = 0x200, scoped, tag = 'output window, operand 2, single buffered']
    %23 = vsyncpa [#allocation3], 0
    %24 = vsyncpa [#allocation7], 0
    %25 = vsyncpa [#allocation10], 0
    %26 = vsyncpa [#allocation13], 0
    %27 = vsyncpa [#allocation4], 0
    %28 = vsyncpa [#allocation16], 0
    %29 = vsyncpa [#allocation5], 0
    // Predicated region
    $region2: #{bgrl_forward.1} parent=1 // pred_check
      _
    $region3: #{bgrl_forward.1} parent=1 // pred_check_branch
      %31 = sbr.rel (0) target = $region5
    $region4: #{bgrl_forward.1} parent=1 // pred_region
      _
    $region5: #{bgrl_forward.1} parent=1 // pred_fallthru
      _
    // Predicated region
    $region6: #{bgrl_forward.1} parent=1 // pred_check
      _
    $region7: #{bgrl_forward.1} parent=1 // pred_check_branch
      %33 = sbr.rel (0) target = $region9
    $region8: #{bgrl_forward.1} parent=1 // pred_region
      _
    $region9: #{bgrl_forward.1} parent=1 // pred_fallthru
      _
    // Predicated region
    $region10: #{bgrl_forward.1} parent=1 // pred_check
      _
    $region11: #{bgrl_forward.1} parent=1 // pred_check_branch
      %35 = sbr.rel (0) target = $region13
    $region12: #{bgrl_forward.1} parent=1 // pred_region
      %s37 = ssub.s32 2048, 2048
      %38 = vsyncadd [#allocation3], %s37
      %s39 = sshll.u32 [#allocation2], 4
      %s40 = int_to_ptr.vmem [resolvable:$true] %s39
      %45 = dma.hbm_to_vmem [thread:$0]  %s2, 2048, %s40, [#allocation3], 128, 128, 8
    $region13: #{bgrl_forward.1} parent=1 // pred_fallthru
      _
    // Predicated region
    $region14: #{bgrl_forward.1} parent=1 // pred_check
      _
    $region15: #{bgrl_forward.1} parent=1 // pred_check_branch
      %47 = sbr.rel (0) target = $region17
    $region16: #{bgrl_forward.1} parent=1 // pred_region
      _
    $region17: #{bgrl_forward.1} parent=1 // pred_fallthru
      _
    // Predicated region
    $region18: #{bgrl_forward.1} parent=1 // pred_check
      _
    $region19: #{bgrl_forward.1} parent=1 // pred_check_branch
      %49 = sbr.rel (0) target = $region21
    $region20: #{bgrl_forward.1} parent=1 // pred_region
      %s51 = ssub.s32 2048, 2048
      %52 = vsyncadd [#allocation7], %s51
      %s53 = sshll.u32 [#allocation6], 4
      %s54 = int_to_ptr.vmem [resolvable:$true] %s53
      %59 = dma.hbm_to_vmem [thread:$0]  %s4, 2048, %s54, [#allocation7], 128, 128, 8
    $region21: #{bgrl_forward.1} parent=1 // pred_fallthru
      _
    // Predicated region
    $region22: #{bgrl_forward.1} parent=1 // pred_check
      _
    $region23: #{bgrl_forward.1} parent=1 // pred_check_branch
      %61 = sbr.rel (0) target = $region25
    $region24: #{bgrl_forward.1} parent=1 // pred_region
      _
    $region25: #{bgrl_forward.1} parent=1 // pred_fallthru
      _
    // Predicated region
    $region26: #{bgrl_forward.1} parent=1 // pred_check
      _
    $region27: #{bgrl_forward.1} parent=1 // pred_check_branch
      %63 = sbr.rel (0) target = $region29
    $region28: #{bgrl_forward.1} parent=1 // pred_region
      %s65 = ssub.s32 2048, 2048
      %66 = vsyncadd [#allocation7], %s65
      %s67 = sshll.u32 [#allocation8], 4
      %s68 = int_to_ptr.vmem [resolvable:$true] %s67
      %73 = dma.hbm_to_vmem [thread:$0]  %s6, 2048, %s68, [#allocation7], 128, 128, 8
    $region29: #{bgrl_forward.1} parent=1 // pred_fallthru
      _
    // Predicated region
    $region30: #{bgrl_forward.1} parent=1 // pred_check
      _
    $region31: #{bgrl_forward.1} parent=1 // pred_check_branch
      %75 = sbr.rel (0) target = $region33
    $region32: #{bgrl_forward.1} parent=1 // pred_region
      _
    $region33: #{bgrl_forward.1} parent=1 // pred_fallthru
      _
    // Predicated region
    $region34: #{bgrl_forward.1} parent=1 // pred_check
      _
    $region35: #{bgrl_forward.1} parent=1 // pred_check_branch
      %77 = sbr.rel (0) target = $region37
    $region36: #{bgrl_forward.1} parent=1 // pred_region
      %s79 = ssub.s32 2048, 2048
      %80 = vsyncadd [#allocation10], %s79
      %s81 = sshll.u32 [#allocation9], 4
      %s82 = int_to_ptr.vmem [resolvable:$true] %s81
      %87 = dma.hbm_to_vmem [thread:$0]  %s8, 2048, %s82, [#allocation10], 128, 128, 8
    $region37: #{bgrl_forward.1} parent=1 // pred_fallthru
      _
    // Predicated region
    $region38: #{bgrl_forward.1} parent=1 // pred_check
      _
    $region39: #{bgrl_forward.1} parent=1 // pred_check_branch
      %89 = sbr.rel (0) target = $region41
    $region40: #{bgrl_forward.1} parent=1 // pred_region
      _
    $region41: #{bgrl_forward.1} parent=1 // pred_fallthru
      _
    // Predicated region
    $region42: #{bgrl_forward.1} parent=1 // pred_check
      _
    $region43: #{bgrl_forward.1} parent=1 // pred_check_branch
      %91 = sbr.rel (0) target = $region45
    $region44: #{bgrl_forward.1} parent=1 // pred_region
      %s93 = ssub.s32 2048, 2048
      %94 = vsyncadd [#allocation10], %s93
      %s95 = sshll.u32 [#allocation11], 4
      %s96 = int_to_ptr.vmem [resolvable:$true] %s95
      %101 = dma.hbm_to_vmem [thread:$0]  %s10, 2048, %s96, [#allocation10], 128, 128, 8
    $region45: #{bgrl_forward.1} parent=1 // pred_fallthru
      _
    // Predicated region
    $region46: #{bgrl_forward.1} parent=1 // pred_check
      _
    $region47: #{bgrl_forward.1} parent=1 // pred_check_branch
      %103 = sbr.rel (0) target = $region49
    $region48: #{bgrl_forward.1} parent=1 // pred_region
      _
    $region49: #{bgrl_forward.1} parent=1 // pred_fallthru
      _
    // Predicated region
    $region50: #{bgrl_forward.1} parent=1 // pred_check
      _
    $region51: #{bgrl_forward.1} parent=1 // pred_check_branch
      %105 = sbr.rel (0) target = $region53
    $region52: #{bgrl_forward.1} parent=1 // pred_region
      %s107 = ssub.s32 2048, 2048
      %108 = vsyncadd [#allocation13], %s107
      %s109 = sshll.u32 [#allocation12], 4
      %s110 = int_to_ptr.vmem [resolvable:$true] %s109
      %115 = dma.hbm_to_vmem [thread:$0]  %s12, 2048, %s110, [#allocation13], 128, 128, 8
    $region53: #{bgrl_forward.1} parent=1 // pred_fallthru
      _
    // Predicated region
    $region54: #{bgrl_forward.1} parent=1 // pred_check
      _
    $region55: #{bgrl_forward.1} parent=1 // pred_check_branch
      %117 = sbr.rel (0) target = $region57
    $region56: #{bgrl_forward.1} parent=1 // pred_region
      _
    $region57: #{bgrl_forward.1} parent=1 // pred_fallthru
      _
    // Predicated region
    $region58: #{bgrl_forward.1} parent=1 // pred_check
      _
    $region59: #{bgrl_forward.1} parent=1 // pred_check_branch
      %119 = sbr.rel (0) target = $region61
    $region60: #{bgrl_forward.1} parent=1 // pred_region
      _
    $region61: #{bgrl_forward.1} parent=1 // pred_fallthru
      _
    // Predicated region
    $region62: #{bgrl_forward.1} parent=1 // pred_check
      _
    $region63: #{bgrl_forward.1} parent=1 // pred_check_branch
      %121 = sbr.rel (0) target = $region65
    $region64: #{bgrl_forward.1} parent=1 // pred_region
      %122 = dma.done [#allocation3], 2048
    $region65: #{bgrl_forward.1} parent=1 // pred_fallthru
      _
    // Predicated region
    $region66: #{bgrl_forward.1} parent=1 // pred_check
      _
    $region67: #{bgrl_forward.1} parent=1 // pred_check_branch
      %124 = sbr.rel (0) target = $region69
    $region68: #{bgrl_forward.1} parent=1 // pred_region
      %125 = dma.done [#allocation7], 2048
    $region69: #{bgrl_forward.1} parent=1 // pred_fallthru
      _
    // Predicated region
    $region70: #{bgrl_forward.1} parent=1 // pred_check
      _
    $region71: #{bgrl_forward.1} parent=1 // pred_check_branch
      %127 = sbr.rel (0) target = $region73
    $region72: #{bgrl_forward.1} parent=1 // pred_region
      %128 = dma.done [#allocation7], 2048
    $region73: #{bgrl_forward.1} parent=1 // pred_fallthru
      _
    // Predicated region
    $region74: #{bgrl_forward.1} parent=1 // pred_check
      _
    $region75: #{bgrl_forward.1} parent=1 // pred_check_branch
      %130 = sbr.rel (0) target = $region77
    $region76: #{bgrl_forward.1} parent=1 // pred_region
      %131 = dma.done [#allocation10], 2048
    $region77: #{bgrl_forward.1} parent=1 // pred_fallthru
      _
    // Predicated region
    $region78: #{bgrl_forward.1} parent=1 // pred_check
      _
    $region79: #{bgrl_forward.1} parent=1 // pred_check_branch
      %133 = sbr.rel (0) target = $region81
    $region80: #{bgrl_forward.1} parent=1 // pred_region
      %134 = dma.done [#allocation10], 2048
    $region81: #{bgrl_forward.1} parent=1 // pred_fallthru
      _
    // Predicated region
    $region82: #{bgrl_forward.1} parent=1 // pred_check
      _
    $region83: #{bgrl_forward.1} parent=1 // pred_check_branch
      %136 = sbr.rel (0) target = $region85
    $region84: #{bgrl_forward.1} parent=1 // pred_region
      %137 = dma.done [#allocation13], 2048
    $region85: #{bgrl_forward.1} parent=1 // pred_fallthru
      _
    %v138 = vld [vmem:[%s14] sm:$0xff]
    %v139 = vld [vmem:[%s14 + $0x8] sm:$0xff]
    %v140 = vld [vmem:[%s0] sm:$0xff]
    %v141 = vld [vmem:[#allocation2] sm:$0xff]
    %v142 = vld [vmem:[#allocation2 + $0x8] sm:$0xff]
    %v143 = vld [vmem:[#allocation2 + $0x10] sm:$0xff]
    %v144 = vld [vmem:[#allocation2 + $0x18] sm:$0xff]
    %v145 = vld [vmem:[#allocation2 + $0x20] sm:$0xff]
    %v146 = vld [vmem:[#allocation2 + $0x28] sm:$0xff]
    %v147 = vld [vmem:[#allocation2 + $0x30] sm:$0xff]
    %v148 = vld [vmem:[#allocation2 + $0x38] sm:$0xff]
    %v149 = vld [vmem:[#allocation2 + $0x40] sm:$0xff]
    %v150 = vld [vmem:[#allocation2 + $0x48] sm:$0xff]
    %v151 = vld [vmem:[#allocation2 + $0x50] sm:$0xff]
    %v152 = vld [vmem:[#allocation2 + $0x58] sm:$0xff]
    %v153 = vld [vmem:[#allocation2 + $0x60] sm:$0xff]
    %v154 = vld [vmem:[#allocation2 + $0x68] sm:$0xff]
    %v155 = vld [vmem:[#allocation2 + $0x70] sm:$0xff]
    %v156 = vld [vmem:[#allocation2 + $0x78] sm:$0xff]
    %v157 = vld [vmem:[%s3] sm:$0x1]
    %v158 = vld [vmem:[#allocation6] sm:$0xff]
    %v159 = vld [vmem:[#allocation6 + $0x8] sm:$0xff]
    %v160 = vld [vmem:[#allocation6 + $0x10] sm:$0xff]
    %v161 = vld [vmem:[#allocation6 + $0x18] sm:$0xff]
    %v162 = vld [vmem:[#allocation6 + $0x20] sm:$0xff]
    %v163 = vld [vmem:[#allocation6 + $0x28] sm:$0xff]
    %v164 = vld [vmem:[#allocation6 + $0x30] sm:$0xff]
    %v165 = vld [vmem:[#allocation6 + $0x38] sm:$0xff]
    %v166 = vld [vmem:[#allocation6 + $0x40] sm:$0xff]
    %v167 = vld [vmem:[#allocation6 + $0x48] sm:$0xff]
    %v168 = vld [vmem:[#allocation6 + $0x50] sm:$0xff]
    %v169 = vld [vmem:[#allocation6 + $0x58] sm:$0xff]
    %v170 = vld [vmem:[#allocation6 + $0x60] sm:$0xff]
    %v171 = vld [vmem:[#allocation6 + $0x68] sm:$0xff]
    %v172 = vld [vmem:[#allocation6 + $0x70] sm:$0xff]
    %v173 = vld [vmem:[#allocation6 + $0x78] sm:$0xff]
    %v174 = vld [vmem:[%s5] sm:$0x1]
    %v176 = vlaneseq
    %v177 = vshrl.u32 %v176, 7
    %v178 = vsub.s32 0, %v177
    %v179 = vrot.slane %v157, %v178
    %181 = vmatprep.subr.mxu0 0.0
    %182 = vmatpush1.msra.mxu0 %v156
    %183 = vmatprep.subr.mxu0 0.0
    %184 = vmatpush1.msra.mxu0 %v155
    %185 = vmatprep.subr.mxu0 0.0
    %186 = vmatpush1.msra.mxu0 %v154
    %187 = vmatprep.subr.mxu0 0.0
    %188 = vmatpush1.msra.mxu0 %v153
    %189 = vmatprep.subr.mxu0 0.0
    %190 = vmatpush1.msra.mxu0 %v152
    %191 = vmatprep.subr.mxu0 0.0
    %192 = vmatpush1.msra.mxu0 %v151
    %193 = vmatprep.subr.mxu0 0.0
    %194 = vmatpush1.msra.mxu0 %v150
    %195 = vmatprep.subr.mxu0 0.0
    %196 = vmatpush1.msra.mxu0 %v149
    %197 = vmatprep.subr.mxu0 0.0
    %198 = vmatpush1.msra.mxu0 %v148
    %199 = vmatprep.subr.mxu0 0.0
    %200 = vmatpush1.msra.mxu0 %v147
    %201 = vmatprep.subr.mxu0 0.0
    %202 = vmatpush1.msra.mxu0 %v146
    %203 = vmatprep.subr.mxu0 0.0
    %204 = vmatpush1.msra.mxu0 %v145
    %205 = vmatprep.subr.mxu0 0.0
    %206 = vmatpush1.msra.mxu0 %v144
    %207 = vmatprep.subr.mxu0 0.0
    %208 = vmatpush1.msra.mxu0 %v143
    %209 = vmatprep.subr.mxu0 0.0
    %210 = vmatpush1.msra.mxu0 %v142
    %211 = vmatprep.subr.mxu0 0.0
    %212 = vmatpush1.msra.mxu0 %v141
    %213 = vmatprep.subr.mxu0 0.0
    %214 = vmatpush2.msra.mxu0 0.0
    %215 = vmatprep.subr.mxu0 0.0
    %216 = vmatpush2.msra.mxu0 0.0
    %217 = vmatprep.subr.mxu0 0.0
    %218 = vmatpush2.msra.mxu0 0.0
    %219 = vmatprep.subr.mxu0 0.0
    %220 = vmatpush2.msra.mxu0 0.0
    %221 = vmatprep.subr.mxu0 0.0
    %222 = vmatpush2.msra.mxu0 0.0
    %223 = vmatprep.subr.mxu0 0.0
    %224 = vmatpush2.msra.mxu0 0.0
    %225 = vmatprep.subr.mxu0 0.0
    %226 = vmatpush2.msra.mxu0 0.0
    %227 = vmatprep.subr.mxu0 0.0
    %228 = vmatpush2.msra.mxu0 0.0
    %229 = vmatprep.subr.mxu0 0.0
    %230 = vmatpush2.msra.mxu0 0.0
    %231 = vmatprep.subr.mxu0 0.0
    %232 = vmatpush2.msra.mxu0 0.0
    %233 = vmatprep.subr.mxu0 0.0
    %234 = vmatpush2.msra.mxu0 0.0
    %235 = vmatprep.subr.mxu0 0.0
    %236 = vmatpush2.msra.mxu0 0.0
    %237 = vmatprep.subr.mxu0 0.0
    %238 = vmatpush2.msra.mxu0 0.0
    %239 = vmatprep.subr.mxu0 0.0
    %240 = vmatpush2.msra.mxu0 0.0
    %241 = vmatprep.subr.mxu0 0.0
    %242 = vmatpush2.msra.mxu0 0.0
    %243 = vmatprep.subr.mxu0 0.0
    %244 = vmatpush2.msra.mxu0 0.0
    %245 = vmatprep.mubr.f32.mxu0 0.0
    %246 = vmatmul.mubr.f32.gmra.mxu0 %v140
    %v247 = vpop.f32.mrf.mxu0
    %v248 = vadd.f32 %v179, %v247
    %v249 = vpop.f32.mrf.mxu0
    %250 = vdwg.mxu0
    %v251 = vmax.f32 %v248, 0.0
    %v253 = vlaneseq
    %v254 = vshrl.u32 %v253, 7
    %v255 = vsub.s32 0, %v254
    %v256 = vrot.slane %v174, %v255
    %258 = vmatprep.subr.mxu0 0.0
    %259 = vmatpush1.msra.mxu0 %v173
    %260 = vmatprep.subr.mxu0 0.0
    %261 = vmatpush1.msra.mxu0 %v172
    %262 = vmatprep.subr.mxu0 0.0
    %263 = vmatpush1.msra.mxu0 %v171
    %264 = vmatprep.subr.mxu0 0.0
    %265 = vmatpush1.msra.mxu0 %v170
    %266 = vmatprep.subr.mxu0 0.0
    %267 = vmatpush1.msra.mxu0 %v169
    %268 = vmatprep.subr.mxu0 0.0
    %269 = vmatpush1.msra.mxu0 %v168
    %270 = vmatprep.subr.mxu0 0.0
    %271 = vmatpush1.msra.mxu0 %v167
    %272 = vmatprep.subr.mxu0 0.0
    %273 = vmatpush1.msra.mxu0 %v166
    %274 = vmatprep.subr.mxu0 0.0
    %275 = vmatpush1.msra.mxu0 %v165
    %276 = vmatprep.subr.mxu0 0.0
    %277 = vmatpush1.msra.mxu0 %v164
    %278 = vmatprep.subr.mxu0 0.0
    %279 = vmatpush1.msra.mxu0 %v163
    %280 = vmatprep.subr.mxu0 0.0
    %281 = vmatpush1.msra.mxu0 %v162
    %282 = vmatprep.subr.mxu0 0.0
    %283 = vmatpush1.msra.mxu0 %v161
    %284 = vmatprep.subr.mxu0 0.0
    %285 = vmatpush1.msra.mxu0 %v160
    %286 = vmatprep.subr.mxu0 0.0
    %287 = vmatpush1.msra.mxu0 %v159
    %288 = vmatprep.subr.mxu0 0.0
    %289 = vmatpush1.msra.mxu0 %v158
    %290 = vmatprep.subr.mxu0 0.0
    %291 = vmatpush2.msra.mxu0 0.0
    %292 = vmatprep.subr.mxu0 0.0
    %293 = vmatpush2.msra.mxu0 0.0
    %294 = vmatprep.subr.mxu0 0.0
    %295 = vmatpush2.msra.mxu0 0.0
    %296 = vmatprep.subr.mxu0 0.0
    %297 = vmatpush2.msra.mxu0 0.0
    %298 = vmatprep.subr.mxu0 0.0
    %299 = vmatpush2.msra.mxu0 0.0
    %300 = vmatprep.subr.mxu0 0.0
    %301 = vmatpush2.msra.mxu0 0.0
    %302 = vmatprep.subr.mxu0 0.0
    %303 = vmatpush2.msra.mxu0 0.0
    %304 = vmatprep.subr.mxu0 0.0
    %305 = vmatpush2.msra.mxu0 0.0
    %306 = vmatprep.subr.mxu0 0.0
    %307 = vmatpush2.msra.mxu0 0.0
    %308 = vmatprep.subr.mxu0 0.0
    %309 = vmatpush2.msra.mxu0 0.0
    %310 = vmatprep.subr.mxu0 0.0
    %311 = vmatpush2.msra.mxu0 0.0
    %312 = vmatprep.subr.mxu0 0.0
    %313 = vmatpush2.msra.mxu0 0.0
    %314 = vmatprep.subr.mxu0 0.0
    %315 = vmatpush2.msra.mxu0 0.0
    %316 = vmatprep.subr.mxu0 0.0
    %317 = vmatpush2.msra.mxu0 0.0
    %318 = vmatprep.subr.mxu0 0.0
    %319 = vmatpush2.msra.mxu0 0.0
    %320 = vmatprep.subr.mxu0 0.0
    %321 = vmatpush2.msra.mxu0 0.0
    %322 = vmatprep.mubr.f32.mxu0 0.0
    %323 = vmatmul.mubr.f32.gmra.mxu0 %v251
    %v324 = vpop.f32.mrf.mxu0
    %v325 = vadd.f32 %v256, %v324
    %v326 = vpop.f32.mrf.mxu0
    %327 = vdwg.mxu0
    %v328 = vmul.f32 %v138, %v138
    %v329 = vmul.f32 %v139, %v139
    %330 = vmatprep.subr.mxu0 0.0
    %331 = vmatpush1.xpose.msra.mxu0 0.0
    %332 = vmatprep.subr.mxu0 0.0
    %333 = vmatpush1.xpose.msra.mxu0 0.0
    %334 = vmatprep.subr.mxu0 0.0
    %335 = vmatpush1.xpose.msra.mxu0 0.0
    %336 = vmatprep.subr.mxu0 0.0
    %337 = vmatpush1.xpose.msra.mxu0 0.0
    %338 = vmatprep.subr.mxu0 0.0
    %339 = vmatpush1.xpose.msra.mxu0 0.0
    %340 = vmatprep.subr.mxu0 0.0
    %341 = vmatpush1.xpose.msra.mxu0 0.0
    %342 = vmatprep.subr.mxu0 0.0
    %343 = vmatpush1.xpose.msra.mxu0 0.0
    %344 = vmatprep.subr.mxu0 0.0
    %345 = vmatpush1.xpose.msra.mxu0 0.0
    %346 = vmatprep.subr.mxu0 0.0
    %347 = vmatpush1.xpose.msra.mxu0 0.0
    %348 = vmatprep.subr.mxu0 0.0
    %349 = vmatpush1.xpose.msra.mxu0 0.0
    %350 = vmatprep.subr.mxu0 0.0
    %351 = vmatpush1.xpose.msra.mxu0 0.0
    %352 = vmatprep.subr.mxu0 0.0
    %353 = vmatpush1.xpose.msra.mxu0 0.0
    %354 = vmatprep.subr.mxu0 0.0
    %355 = vmatpush1.xpose.msra.mxu0 0.0
    %356 = vmatprep.subr.mxu0 0.0
    %357 = vmatpush1.xpose.msra.mxu0 0.0
    %358 = vmatprep.subr.mxu0 0.0
    %359 = vmatpush1.xpose.msra.mxu0 %v329
    %360 = vmatprep.subr.mxu0 0.0
    %361 = vmatpush1.xpose.msra.mxu0 %v328
    %362 = vmatprep.subr.mxu0 0.0
    %363 = vmatpush2.xpose.msra.mxu0 0.0
    %364 = vmatprep.subr.mxu0 0.0
    %365 = vmatpush2.xpose.msra.mxu0 0.0
    %366 = vmatprep.subr.mxu0 0.0
    %367 = vmatpush2.xpose.msra.mxu0 0.0
    %368 = vmatprep.subr.mxu0 0.0
    %369 = vmatpush2.xpose.msra.mxu0 0.0
    %370 = vmatprep.subr.mxu0 0.0
    %371 = vmatpush2.xpose.msra.mxu0 0.0
    %372 = vmatprep.subr.mxu0 0.0
    %373 = vmatpush2.xpose.msra.mxu0 0.0
    %374 = vmatprep.subr.mxu0 0.0
    %375 = vmatpush2.xpose.msra.mxu0 0.0
    %376 = vmatprep.subr.mxu0 0.0
    %377 = vmatpush2.xpose.msra.mxu0 0.0
    %378 = vmatprep.subr.mxu0 0.0
    %379 = vmatpush2.xpose.msra.mxu0 0.0
    %380 = vmatprep.subr.mxu0 0.0
    %381 = vmatpush2.xpose.msra.mxu0 0.0
    %382 = vmatprep.subr.mxu0 0.0
    %383 = vmatpush2.xpose.msra.mxu0 0.0
    %384 = vmatprep.subr.mxu0 0.0
    %385 = vmatpush2.xpose.msra.mxu0 0.0
    %386 = vmatprep.subr.mxu0 0.0
    %387 = vmatpush2.xpose.msra.mxu0 0.0
    %388 = vmatprep.subr.mxu0 0.0
    %389 = vmatpush2.xpose.msra.mxu0 0.0
    %390 = vmatprep.subr.mxu0 0.0
    %391 = vmatpush2.xpose.msra.mxu0 0.0
    %392 = vmatprep.subr.mxu0 0.0
    %393 = vmatpush2.xpose.msra.mxu0 0.0
    %394 = vmatprep.mubr.f32.mxu0 0.0
    %395 = vmatmul.mubr.f32.gmra.mxu0 1.0
    %v396 = vpop.f32.mrf.mxu0
    %v397 = vadd.f32 0.0, %v396
    %v398 = vpop.f32.mrf.mxu0
    %399 = vdwg.mxu0
    %400 = vmatprep.subr.mxu0 0.0
    %401 = vmatpush1.xpose.msra.mxu0 0.0
    %402 = vmatprep.subr.mxu0 0.0
    %403 = vmatpush1.xpose.msra.mxu0 0.0
    %404 = vmatprep.subr.mxu0 0.0
    %405 = vmatpush1.xpose.msra.mxu0 0.0
    %406 = vmatprep.subr.mxu0 0.0
    %407 = vmatpush1.xpose.msra.mxu0 0.0
    %408 = vmatprep.subr.mxu0 0.0
    %409 = vmatpush1.xpose.msra.mxu0 0.0
    %410 = vmatprep.subr.mxu0 0.0
    %411 = vmatpush1.xpose.msra.mxu0 0.0
    %412 = vmatprep.subr.mxu0 0.0
    %413 = vmatpush1.xpose.msra.mxu0 0.0
    %414 = vmatprep.subr.mxu0 0.0
    %415 = vmatpush1.xpose.msra.mxu0 0.0
    %416 = vmatprep.subr.mxu0 0.0
    %417 = vmatpush1.xpose.msra.mxu0 0.0
    %418 = vmatprep.subr.mxu0 0.0
    %419 = vmatpush1.xpose.msra.mxu0 0.0
    %420 = vmatprep.subr.mxu0 0.0
    %421 = vmatpush1.xpose.msra.mxu0 0.0
    %422 = vmatprep.subr.mxu0 0.0
    %423 = vmatpush1.xpose.msra.mxu0 0.0
    %424 = vmatprep.subr.mxu0 0.0
    %425 = vmatpush1.xpose.msra.mxu0 0.0
    %426 = vmatprep.subr.mxu0 0.0
    %427 = vmatpush1.xpose.msra.mxu0 0.0
    %428 = vmatprep.subr.mxu0 0.0
    %429 = vmatpush1.xpose.msra.mxu0 %v139
    %430 = vmatprep.subr.mxu0 0.0
    %431 = vmatpush1.xpose.msra.mxu0 %v138
    %432 = vmatprep.subr.mxu0 0.0
    %433 = vmatpush2.xpose.msra.mxu0 0.0
    %434 = vmatprep.subr.mxu0 0.0
    %435 = vmatpush2.xpose.msra.mxu0 0.0
    %436 = vmatprep.subr.mxu0 0.0
    %437 = vmatpush2.xpose.msra.mxu0 0.0
    %438 = vmatprep.subr.mxu0 0.0
    %439 = vmatpush2.xpose.msra.mxu0 0.0
    %440 = vmatprep.subr.mxu0 0.0
    %441 = vmatpush2.xpose.msra.mxu0 0.0
    %442 = vmatprep.subr.mxu0 0.0
    %443 = vmatpush2.xpose.msra.mxu0 0.0
    %444 = vmatprep.subr.mxu0 0.0
    %445 = vmatpush2.xpose.msra.mxu0 0.0
    %446 = vmatprep.subr.mxu0 0.0
    %447 = vmatpush2.xpose.msra.mxu0 0.0
    %448 = vmatprep.subr.mxu0 0.0
    %449 = vmatpush2.xpose.msra.mxu0 0.0
    %450 = vmatprep.subr.mxu0 0.0
    %451 = vmatpush2.xpose.msra.mxu0 0.0
    %452 = vmatprep.subr.mxu0 0.0
    %453 = vmatpush2.xpose.msra.mxu0 0.0
    %454 = vmatprep.subr.mxu0 0.0
    %455 = vmatpush2.xpose.msra.mxu0 0.0
    %456 = vmatprep.subr.mxu0 0.0
    %457 = vmatpush2.xpose.msra.mxu0 0.0
    %458 = vmatprep.subr.mxu0 0.0
    %459 = vmatpush2.xpose.msra.mxu0 0.0
    %460 = vmatprep.subr.mxu0 0.0
    %461 = vmatpush2.xpose.msra.mxu0 0.0
    %462 = vmatprep.subr.mxu0 0.0
    %463 = vmatpush2.xpose.msra.mxu0 0.0
    %464 = vmatprep.mubr.f32.mxu0 0.0
    %465 = vmatmul.mubr.f32.gmra.mxu0 %v325
    %v466 = vpop.f32.mrf.mxu0
    %v467 = vadd.f32 0.0, %v466
    %v468 = vpop.f32.mrf.mxu0
    %469 = vdwg.mxu0
    %v470 = vmul.f32 %v467, 2.0
    %v471 = vlaneseq
    %v472 = vshrl.u32 %v471, 7
    %v473 = vsub.s32 0, %v472
    %v474 = vrot.slane %v397, %v473
    %v475 = vsub.f32 %v474, %v470
    %vm476 = vcmask 130048
    %v477 = vsel %vm476, %v475, inf
    %478 = vmin.xlane.f32.xlu0 %v477
    %v479 = vpop.xlane.xlu0 %478
    %v480 = vlaneseq
    %v481 = vand.u32 %v480, 127
    %vm482 = vcmp.le.f32.partialorder %v475, %v479
    %v483 = vsel %vm482, %v481, 16
    %v484 = vsel %vm476, %v483, 2147483647
    %v485 = vand.u32 %v484, 65535
    %v486 = vshra.s32 %v484, 16
    %v487 = vcvt.s32.f32 %v485
    %v488 = vcvt.s32.f32 %v486
    %489 = vmin.xlane.f32.xlu0 %v488
    %v490 = vpop.xlane.xlu0 %489
    %vm491 = vcmp.eq.f32.partialorder %v488, %v490
    %v492 = vsel %vm491, %v487, inf
    %493 = vmin.xlane.f32.xlu0 %v492
    %v494 = vpop.xlane.xlu0 %493
    %v495 = vcvt.f32.s32 %v494
    %v496 = vcvt.f32.s32 %v490
    %v497 = vshll.u32 %v496, 16
    %v498 = vadd.s32 %v497, %v495
    %vm499 = vcmp.eq.s32.totalorder %v481, %v498
    %v500 = vsel %vm499, 1, 0
    %v501 = vcvt.s32.f32 %v500
    %v503 = vsel %vm476, %v501, 0
    %505 = vmatprep.subr.mxu0 0.0
    %506 = vmatpush1.msra.mxu0 0.0
    %507 = vmatprep.subr.mxu0 0.0
    %508 = vmatpush1.msra.mxu0 0.0
    %509 = vmatprep.subr.mxu0 0.0
    %510 = vmatpush1.msra.mxu0 0.0
    %511 = vmatprep.subr.mxu0 0.0
    %512 = vmatpush1.msra.mxu0 0.0
    %513 = vmatprep.subr.mxu0 0.0
    %514 = vmatpush1.msra.mxu0 0.0
    %515 = vmatprep.subr.mxu0 0.0
    %516 = vmatpush1.msra.mxu0 0.0
    %517 = vmatprep.subr.mxu0 0.0
    %518 = vmatpush1.msra.mxu0 0.0
    %519 = vmatprep.subr.mxu0 0.0
    %520 = vmatpush1.msra.mxu0 0.0
    %521 = vmatprep.subr.mxu0 0.0
    %522 = vmatpush1.msra.mxu0 0.0
    %523 = vmatprep.subr.mxu0 0.0
    %524 = vmatpush1.msra.mxu0 0.0
    %525 = vmatprep.subr.mxu0 0.0
    %526 = vmatpush1.msra.mxu0 0.0
    %527 = vmatprep.subr.mxu0 0.0
    %528 = vmatpush1.msra.mxu0 0.0
    %529 = vmatprep.subr.mxu0 0.0
    %530 = vmatpush1.msra.mxu0 0.0
    %531 = vmatprep.subr.mxu0 0.0
    %532 = vmatpush1.msra.mxu0 0.0
    %533 = vmatprep.subr.mxu0 0.0
    %534 = vmatpush1.msra.mxu0 %v139
    %535 = vmatprep.subr.mxu0 0.0
    %536 = vmatpush1.msra.mxu0 %v138
    %537 = vmatprep.subr.mxu0 0.0
    %538 = vmatpush2.msra.mxu0 0.0
    %539 = vmatprep.subr.mxu0 0.0
    %540 = vmatpush2.msra.mxu0 0.0
    %541 = vmatprep.subr.mxu0 0.0
    %542 = vmatpush2.msra.mxu0 0.0
    %543 = vmatprep.subr.mxu0 0.0
    %544 = vmatpush2.msra.mxu0 0.0
    %545 = vmatprep.subr.mxu0 0.0
    %546 = vmatpush2.msra.mxu0 0.0
    %547 = vmatprep.subr.mxu0 0.0
    %548 = vmatpush2.msra.mxu0 0.0
    %549 = vmatprep.subr.mxu0 0.0
    %550 = vmatpush2.msra.mxu0 0.0
    %551 = vmatprep.subr.mxu0 0.0
    %552 = vmatpush2.msra.mxu0 0.0
    %553 = vmatprep.subr.mxu0 0.0
    %554 = vmatpush2.msra.mxu0 0.0
    %555 = vmatprep.subr.mxu0 0.0
    %556 = vmatpush2.msra.mxu0 0.0
    %557 = vmatprep.subr.mxu0 0.0
    %558 = vmatpush2.msra.mxu0 0.0
    %559 = vmatprep.subr.mxu0 0.0
    %560 = vmatpush2.msra.mxu0 0.0
    %561 = vmatprep.subr.mxu0 0.0
    %562 = vmatpush2.msra.mxu0 0.0
    %563 = vmatprep.subr.mxu0 0.0
    %564 = vmatpush2.msra.mxu0 0.0
    %565 = vmatprep.subr.mxu0 0.0
    %566 = vmatpush2.msra.mxu0 0.0
    %567 = vmatprep.subr.mxu0 0.0
    %568 = vmatpush2.msra.mxu0 0.0
    %569 = vmatprep.mubr.f32.mxu0 0.0
    %570 = vmatmul.mubr.f32.gmra.mxu0 %v503
    %v571 = vpop.f32.mrf.mxu0
    %v572 = vadd.f32 0.0, %v571
    %v573 = vpop.f32.mrf.mxu0
    %574 = vdwg.mxu0
    %v575 = vsub.f32 %v325, %v572
    %v576 = vmul.f32 %v575, %v575
    %577 = vadd.xlane.f32.xlu0 %v576
    %v578 = vpop.xlane.xlu0 %577
    %v579 = vrot.slane %v578, 4
    %v580 = vadd.f32 %v578, %v579
    %v581 = vrot.slane %v580, 2
    %v582 = vadd.f32 %v580, %v581
    %v583 = vrot.slane %v582, 1
    %v584 = vadd.f32 %v582, %v583
    %s585 = vtos %v584
    %s586 = smul.f32 %s585, 0.00390625
    %s587 = scalar_lea.smem [#allocation17], 0
    %588 = sst [smem:[%s587]] %s586
    %v589 = vld [vmem:[#allocation11] sm:$0xff]
    %v590 = vld [vmem:[#allocation11 + $0x8] sm:$0xff]
    %v591 = vld [vmem:[#allocation11 + $0x10] sm:$0xff]
    %v592 = vld [vmem:[#allocation11 + $0x18] sm:$0xff]
    %v593 = vld [vmem:[#allocation11 + $0x20] sm:$0xff]
    %v594 = vld [vmem:[#allocation11 + $0x28] sm:$0xff]
    %v595 = vld [vmem:[#allocation11 + $0x30] sm:$0xff]
    %v596 = vld [vmem:[#allocation11 + $0x38] sm:$0xff]
    %v597 = vld [vmem:[#allocation11 + $0x40] sm:$0xff]
    %v598 = vld [vmem:[#allocation11 + $0x48] sm:$0xff]
    %v599 = vld [vmem:[#allocation11 + $0x50] sm:$0xff]
    %v600 = vld [vmem:[#allocation11 + $0x58] sm:$0xff]
    %v601 = vld [vmem:[#allocation11 + $0x60] sm:$0xff]
    %v602 = vld [vmem:[#allocation11 + $0x68] sm:$0xff]
    %v603 = vld [vmem:[#allocation11 + $0x70] sm:$0xff]
    %v604 = vld [vmem:[#allocation11 + $0x78] sm:$0xff]
    %v605 = vld [vmem:[%s11] sm:$0x1]
    %v606 = vld [vmem:[#allocation12] sm:$0xff]
    %v607 = vld [vmem:[#allocation12 + $0x8] sm:$0xff]
    %v608 = vld [vmem:[#allocation12 + $0x10] sm:$0xff]
    %v609 = vld [vmem:[#allocation12 + $0x18] sm:$0xff]
    %v610 = vld [vmem:[#allocation12 + $0x20] sm:$0xff]
    %v611 = vld [vmem:[#allocation12 + $0x28] sm:$0xff]
    %v612 = vld [vmem:[#allocation12 + $0x30] sm:$0xff]
    %v613 = vld [vmem:[#allocation12 + $0x38] sm:$0xff]
    %v614 = vld [vmem:[#allocation12 + $0x40] sm:$0xff]
    %v615 = vld [vmem:[#allocation12 + $0x48] sm:$0xff]
    %v616 = vld [vmem:[#allocation12 + $0x50] sm:$0xff]
    %v617 = vld [vmem:[#allocation12 + $0x58] sm:$0xff]
    %v618 = vld [vmem:[#allocation12 + $0x60] sm:$0xff]
    %v619 = vld [vmem:[#allocation12 + $0x68] sm:$0xff]
    %v620 = vld [vmem:[#allocation12 + $0x70] sm:$0xff]
    %v621 = vld [vmem:[#allocation12 + $0x78] sm:$0xff]
    %v622 = vld [vmem:[%s13] sm:$0x1]
    %v624 = vlaneseq
    %v625 = vshrl.u32 %v624, 7
    %v626 = vsub.s32 0, %v625
    %v627 = vrot.slane %v605, %v626
    %629 = vmatprep.subr.mxu0 0.0
    %630 = vmatpush1.msra.mxu0 %v604
    %631 = vmatprep.subr.mxu0 0.0
    %632 = vmatpush1.msra.mxu0 %v603
    %633 = vmatprep.subr.mxu0 0.0
    %634 = vmatpush1.msra.mxu0 %v602
    %635 = vmatprep.subr.mxu0 0.0
    %636 = vmatpush1.msra.mxu0 %v601
    %637 = vmatprep.subr.mxu0 0.0
    %638 = vmatpush1.msra.mxu0 %v600
    %639 = vmatprep.subr.mxu0 0.0
    %640 = vmatpush1.msra.mxu0 %v599
    %641 = vmatprep.subr.mxu0 0.0
    %642 = vmatpush1.msra.mxu0 %v598
    %643 = vmatprep.subr.mxu0 0.0
    %644 = vmatpush1.msra.mxu0 %v597
    %645 = vmatprep.subr.mxu0 0.0
    %646 = vmatpush1.msra.mxu0 %v596
    %647 = vmatprep.subr.mxu0 0.0
    %648 = vmatpush1.msra.mxu0 %v595
    %649 = vmatprep.subr.mxu0 0.0
    %650 = vmatpush1.msra.mxu0 %v594
    %651 = vmatprep.subr.mxu0 0.0
    %652 = vmatpush1.msra.mxu0 %v593
    %653 = vmatprep.subr.mxu0 0.0
    %654 = vmatpush1.msra.mxu0 %v592
    %655 = vmatprep.subr.mxu0 0.0
    %656 = vmatpush1.msra.mxu0 %v591
    %657 = vmatprep.subr.mxu0 0.0
    %658 = vmatpush1.msra.mxu0 %v590
    %659 = vmatprep.subr.mxu0 0.0
    %660 = vmatpush1.msra.mxu0 %v589
    %661 = vmatprep.subr.mxu0 0.0
    %662 = vmatpush2.msra.mxu0 0.0
    %663 = vmatprep.subr.mxu0 0.0
    %664 = vmatpush2.msra.mxu0 0.0
    %665 = vmatprep.subr.mxu0 0.0
    %666 = vmatpush2.msra.mxu0 0.0
    %667 = vmatprep.subr.mxu0 0.0
    %668 = vmatpush2.msra.mxu0 0.0
    %669 = vmatprep.subr.mxu0 0.0
    %670 = vmatpush2.msra.mxu0 0.0
    %671 = vmatprep.subr.mxu0 0.0
    %672 = vmatpush2.msra.mxu0 0.0
    %673 = vmatprep.subr.mxu0 0.0
    %674 = vmatpush2.msra.mxu0 0.0
    %675 = vmatprep.subr.mxu0 0.0
    %676 = vmatpush2.msra.mxu0 0.0
    %677 = vmatprep.subr.mxu0 0.0
    %678 = vmatpush2.msra.mxu0 0.0
    %679 = vmatprep.subr.mxu0 0.0
    %680 = vmatpush2.msra.mxu0 0.0
    %681 = vmatprep.subr.mxu0 0.0
    %682 = vmatpush2.msra.mxu0 0.0
    %683 = vmatprep.subr.mxu0 0.0
    %684 = vmatpush2.msra.mxu0 0.0
    %685 = vmatprep.subr.mxu0 0.0
    %686 = vmatpush2.msra.mxu0 0.0
    %687 = vmatprep.subr.mxu0 0.0
    %688 = vmatpush2.msra.mxu0 0.0
    %689 = vmatprep.subr.mxu0 0.0
    %690 = vmatpush2.msra.mxu0 0.0
    %691 = vmatprep.subr.mxu0 0.0
    %692 = vmatpush2.msra.mxu0 0.0
    %693 = vmatprep.mubr.f32.mxu0 0.0
    %694 = vmatmul.mubr.f32.gmra.mxu0 %v572
    %v695 = vpop.f32.mrf.mxu0
    %v696 = vadd.f32 %v627, %v695
    %v697 = vpop.f32.mrf.mxu0
    %698 = vdwg.mxu0
    %v699 = vmax.f32 %v696, 0.0
    %v701 = vlaneseq
    %v702 = vshrl.u32 %v701, 7
    %v703 = vsub.s32 0, %v702
    %v704 = vrot.slane %v622, %v703
    %706 = vmatprep.subr.mxu0 0.0
    %707 = vmatpush1.msra.mxu0 %v621
    %708 = vmatprep.subr.mxu0 0.0
    %709 = vmatpush1.msra.mxu0 %v620
    %710 = vmatprep.subr.mxu0 0.0
    %711 = vmatpush1.msra.mxu0 %v619
    %712 = vmatprep.subr.mxu0 0.0
    %713 = vmatpush1.msra.mxu0 %v618
    %714 = vmatprep.subr.mxu0 0.0
    %715 = vmatpush1.msra.mxu0 %v617
    %716 = vmatprep.subr.mxu0 0.0
    %717 = vmatpush1.msra.mxu0 %v616
    %718 = vmatprep.subr.mxu0 0.0
    %719 = vmatpush1.msra.mxu0 %v615
    %720 = vmatprep.subr.mxu0 0.0
    %721 = vmatpush1.msra.mxu0 %v614
    %722 = vmatprep.subr.mxu0 0.0
    %723 = vmatpush1.msra.mxu0 %v613
    %724 = vmatprep.subr.mxu0 0.0
    %725 = vmatpush1.msra.mxu0 %v612
    %726 = vmatprep.subr.mxu0 0.0
    %727 = vmatpush1.msra.mxu0 %v611
    %728 = vmatprep.subr.mxu0 0.0
    %729 = vmatpush1.msra.mxu0 %v610
    %730 = vmatprep.subr.mxu0 0.0
    %731 = vmatpush1.msra.mxu0 %v609
    %732 = vmatprep.subr.mxu0 0.0
    %733 = vmatpush1.msra.mxu0 %v608
    %734 = vmatprep.subr.mxu0 0.0
    %735 = vmatpush1.msra.mxu0 %v607
    %736 = vmatprep.subr.mxu0 0.0
    %737 = vmatpush1.msra.mxu0 %v606
    %738 = vmatprep.subr.mxu0 0.0
    %739 = vmatpush2.msra.mxu0 0.0
    %740 = vmatprep.subr.mxu0 0.0
    %741 = vmatpush2.msra.mxu0 0.0
    %742 = vmatprep.subr.mxu0 0.0
    %743 = vmatpush2.msra.mxu0 0.0
    %744 = vmatprep.subr.mxu0 0.0
    %745 = vmatpush2.msra.mxu0 0.0
    %746 = vmatprep.subr.mxu0 0.0
    %747 = vmatpush2.msra.mxu0 0.0
    %748 = vmatprep.subr.mxu0 0.0
    %749 = vmatpush2.msra.mxu0 0.0
    %750 = vmatprep.subr.mxu0 0.0
    %751 = vmatpush2.msra.mxu0 0.0
    %752 = vmatprep.subr.mxu0 0.0
    %753 = vmatpush2.msra.mxu0 0.0
    %754 = vmatprep.subr.mxu0 0.0
    %755 = vmatpush2.msra.mxu0 0.0
    %756 = vmatprep.subr.mxu0 0.0
    %757 = vmatpush2.msra.mxu0 0.0
    %758 = vmatprep.subr.mxu0 0.0
    %759 = vmatpush2.msra.mxu0 0.0
    %760 = vmatprep.subr.mxu0 0.0
    %761 = vmatpush2.msra.mxu0 0.0
    %762 = vmatprep.subr.mxu0 0.0
    %763 = vmatpush2.msra.mxu0 0.0
    %764 = vmatprep.subr.mxu0 0.0
    %765 = vmatpush2.msra.mxu0 0.0
    %766 = vmatprep.subr.mxu0 0.0
    %767 = vmatpush2.msra.mxu0 0.0
    %768 = vmatprep.subr.mxu0 0.0
    %769 = vmatpush2.msra.mxu0 0.0
    %770 = vmatprep.mubr.f32.mxu0 0.0
    %771 = vmatmul.mubr.f32.gmra.mxu0 %v699
    %v772 = vpop.f32.mrf.mxu0
    %v773 = vadd.f32 %v704, %v772
    %v774 = vpop.f32.mrf.mxu0
    %775 = vdwg.mxu0
    %776 = vst [vmem:[#allocation14] sm:$0xff] %v773
    %v777 = vld [vmem:[%s1] sm:$0xff]
    %v778 = vld [vmem:[#allocation8] sm:$0xff]
    %v779 = vld [vmem:[#allocation8 + $0x8] sm:$0xff]
    %v780 = vld [vmem:[#allocation8 + $0x10] sm:$0xff]
    %v781 = vld [vmem:[#allocation8 + $0x18] sm:$0xff]
    %v782 = vld [vmem:[#allocation8 + $0x20] sm:$0xff]
    %v783 = vld [vmem:[#allocation8 + $0x28] sm:$0xff]
    %v784 = vld [vmem:[#allocation8 + $0x30] sm:$0xff]
    %v785 = vld [vmem:[#allocation8 + $0x38] sm:$0xff]
    %v786 = vld [vmem:[#allocation8 + $0x40] sm:$0xff]
    %v787 = vld [vmem:[#allocation8 + $0x48] sm:$0xff]
    %v788 = vld [vmem:[#allocation8 + $0x50] sm:$0xff]
    %v789 = vld [vmem:[#allocation8 + $0x58] sm:$0xff]
    %v790 = vld [vmem:[#allocation8 + $0x60] sm:$0xff]
    %v791 = vld [vmem:[#allocation8 + $0x68] sm:$0xff]
    %v792 = vld [vmem:[#allocation8 + $0x70] sm:$0xff]
    %v793 = vld [vmem:[#allocation8 + $0x78] sm:$0xff]
    %v794 = vld [vmem:[%s7] sm:$0x1]
    %v795 = vld [vmem:[#allocation9] sm:$0xff]
    %v796 = vld [vmem:[#allocation9 + $0x8] sm:$0xff]
    %v797 = vld [vmem:[#allocation9 + $0x10] sm:$0xff]
    %v798 = vld [vmem:[#allocation9 + $0x18] sm:$0xff]
    %v799 = vld [vmem:[#allocation9 + $0x20] sm:$0xff]
    %v800 = vld [vmem:[#allocation9 + $0x28] sm:$0xff]
    %v801 = vld [vmem:[#allocation9 + $0x30] sm:$0xff]
    %v802 = vld [vmem:[#allocation9 + $0x38] sm:$0xff]
    %v803 = vld [vmem:[#allocation9 + $0x40] sm:$0xff]
    %v804 = vld [vmem:[#allocation9 + $0x48] sm:$0xff]
    %v805 = vld [vmem:[#allocation9 + $0x50] sm:$0xff]
    %v806 = vld [vmem:[#allocation9 + $0x58] sm:$0xff]
    %v807 = vld [vmem:[#allocation9 + $0x60] sm:$0xff]
    %v808 = vld [vmem:[#allocation9 + $0x68] sm:$0xff]
    %v809 = vld [vmem:[#allocation9 + $0x70] sm:$0xff]
    %v810 = vld [vmem:[#allocation9 + $0x78] sm:$0xff]
    %v811 = vld [vmem:[%s9] sm:$0x1]
    %v813 = vlaneseq
    %v814 = vshrl.u32 %v813, 7
    %v815 = vsub.s32 0, %v814
    %v816 = vrot.slane %v794, %v815
    %818 = vmatprep.subr.mxu0 0.0
    %819 = vmatpush1.msra.mxu0 %v793
    %820 = vmatprep.subr.mxu0 0.0
    %821 = vmatpush1.msra.mxu0 %v792
    %822 = vmatprep.subr.mxu0 0.0
    %823 = vmatpush1.msra.mxu0 %v791
    %824 = vmatprep.subr.mxu0 0.0
    %825 = vmatpush1.msra.mxu0 %v790
    %826 = vmatprep.subr.mxu0 0.0
    %827 = vmatpush1.msra.mxu0 %v789
    %828 = vmatprep.subr.mxu0 0.0
    %829 = vmatpush1.msra.mxu0 %v788
    %830 = vmatprep.subr.mxu0 0.0
    %831 = vmatpush1.msra.mxu0 %v787
    %832 = vmatprep.subr.mxu0 0.0
    %833 = vmatpush1.msra.mxu0 %v786
    %834 = vmatprep.subr.mxu0 0.0
    %835 = vmatpush1.msra.mxu0 %v785
    %836 = vmatprep.subr.mxu0 0.0
    %837 = vmatpush1.msra.mxu0 %v784
    %838 = vmatprep.subr.mxu0 0.0
    %839 = vmatpush1.msra.mxu0 %v783
    %840 = vmatprep.subr.mxu0 0.0
    %841 = vmatpush1.msra.mxu0 %v782
    %842 = vmatprep.subr.mxu0 0.0
    %843 = vmatpush1.msra.mxu0 %v781
    %844 = vmatprep.subr.mxu0 0.0
    %845 = vmatpush1.msra.mxu0 %v780
    %846 = vmatprep.subr.mxu0 0.0
    %847 = vmatpush1.msra.mxu0 %v779
    %848 = vmatprep.subr.mxu0 0.0
    %849 = vmatpush1.msra.mxu0 %v778
    %850 = vmatprep.subr.mxu0 0.0
    %851 = vmatpush2.msra.mxu0 0.0
    %852 = vmatprep.subr.mxu0 0.0
    %853 = vmatpush2.msra.mxu0 0.0
    %854 = vmatprep.subr.mxu0 0.0
    %855 = vmatpush2.msra.mxu0 0.0
    %856 = vmatprep.subr.mxu0 0.0
    %857 = vmatpush2.msra.mxu0 0.0
    %858 = vmatprep.subr.mxu0 0.0
    %859 = vmatpush2.msra.mxu0 0.0
    %860 = vmatprep.subr.mxu0 0.0
    %861 = vmatpush2.msra.mxu0 0.0
    %862 = vmatprep.subr.mxu0 0.0
    %863 = vmatpush2.msra.mxu0 0.0
    %864 = vmatprep.subr.mxu0 0.0
    %865 = vmatpush2.msra.mxu0 0.0
    %866 = vmatprep.subr.mxu0 0.0
    %867 = vmatpush2.msra.mxu0 0.0
    %868 = vmatprep.subr.mxu0 0.0
    %869 = vmatpush2.msra.mxu0 0.0
    %870 = vmatprep.subr.mxu0 0.0
    %871 = vmatpush2.msra.mxu0 0.0
    %872 = vmatprep.subr.mxu0 0.0
    %873 = vmatpush2.msra.mxu0 0.0
    %874 = vmatprep.subr.mxu0 0.0
    %875 = vmatpush2.msra.mxu0 0.0
    %876 = vmatprep.subr.mxu0 0.0
    %877 = vmatpush2.msra.mxu0 0.0
    %878 = vmatprep.subr.mxu0 0.0
    %879 = vmatpush2.msra.mxu0 0.0
    %880 = vmatprep.subr.mxu0 0.0
    %881 = vmatpush2.msra.mxu0 0.0
    %882 = vmatprep.mubr.f32.mxu0 0.0
    %883 = vmatmul.mubr.f32.gmra.mxu0 %v777
    %v884 = vpop.f32.mrf.mxu0
    %v885 = vadd.f32 %v816, %v884
    %v886 = vpop.f32.mrf.mxu0
    %887 = vdwg.mxu0
    %v888 = vmax.f32 %v885, 0.0
    %v890 = vlaneseq
    %v891 = vshrl.u32 %v890, 7
    %v892 = vsub.s32 0, %v891
    %v893 = vrot.slane %v811, %v892
    %895 = vmatprep.subr.mxu0 0.0
    %896 = vmatpush1.msra.mxu0 %v810
    %897 = vmatprep.subr.mxu0 0.0
    %898 = vmatpush1.msra.mxu0 %v809
    %899 = vmatprep.subr.mxu0 0.0
    %900 = vmatpush1.msra.mxu0 %v808
    %901 = vmatprep.subr.mxu0 0.0
    %902 = vmatpush1.msra.mxu0 %v807
    %903 = vmatprep.subr.mxu0 0.0
    %904 = vmatpush1.msra.mxu0 %v806
    %905 = vmatprep.subr.mxu0 0.0
    %906 = vmatpush1.msra.mxu0 %v805
    %907 = vmatprep.subr.mxu0 0.0
    %908 = vmatpush1.msra.mxu0 %v804
    %909 = vmatprep.subr.mxu0 0.0
    %910 = vmatpush1.msra.mxu0 %v803
    %911 = vmatprep.subr.mxu0 0.0
    %912 = vmatpush1.msra.mxu0 %v802
    %913 = vmatprep.subr.mxu0 0.0
    %914 = vmatpush1.msra.mxu0 %v801
    %915 = vmatprep.subr.mxu0 0.0
    %916 = vmatpush1.msra.mxu0 %v800
    %917 = vmatprep.subr.mxu0 0.0
    %918 = vmatpush1.msra.mxu0 %v799
    %919 = vmatprep.subr.mxu0 0.0
    %920 = vmatpush1.msra.mxu0 %v798
    %921 = vmatprep.subr.mxu0 0.0
    %922 = vmatpush1.msra.mxu0 %v797
    %923 = vmatprep.subr.mxu0 0.0
    %924 = vmatpush1.msra.mxu0 %v796
    %925 = vmatprep.subr.mxu0 0.0
    %926 = vmatpush1.msra.mxu0 %v795
    %927 = vmatprep.subr.mxu0 0.0
    %928 = vmatpush2.msra.mxu0 0.0
    %929 = vmatprep.subr.mxu0 0.0
    %930 = vmatpush2.msra.mxu0 0.0
    %931 = vmatprep.subr.mxu0 0.0
    %932 = vmatpush2.msra.mxu0 0.0
    %933 = vmatprep.subr.mxu0 0.0
    %934 = vmatpush2.msra.mxu0 0.0
    %935 = vmatprep.subr.mxu0 0.0
    %936 = vmatpush2.msra.mxu0 0.0
    %937 = vmatprep.subr.mxu0 0.0
    %938 = vmatpush2.msra.mxu0 0.0
    %939 = vmatprep.subr.mxu0 0.0
    %940 = vmatpush2.msra.mxu0 0.0
    %941 = vmatprep.subr.mxu0 0.0
    %942 = vmatpush2.msra.mxu0 0.0
    %943 = vmatprep.subr.mxu0 0.0
    %944 = vmatpush2.msra.mxu0 0.0
    %945 = vmatprep.subr.mxu0 0.0
    %946 = vmatpush2.msra.mxu0 0.0
    %947 = vmatprep.subr.mxu0 0.0
    %948 = vmatpush2.msra.mxu0 0.0
    %949 = vmatprep.subr.mxu0 0.0
    %950 = vmatpush2.msra.mxu0 0.0
    %951 = vmatprep.subr.mxu0 0.0
    %952 = vmatpush2.msra.mxu0 0.0
    %953 = vmatprep.subr.mxu0 0.0
    %954 = vmatpush2.msra.mxu0 0.0
    %955 = vmatprep.subr.mxu0 0.0
    %956 = vmatpush2.msra.mxu0 0.0
    %957 = vmatprep.subr.mxu0 0.0
    %958 = vmatpush2.msra.mxu0 0.0
    %959 = vmatprep.mubr.f32.mxu0 0.0
    %960 = vmatmul.mubr.f32.gmra.mxu0 %v888
    %v961 = vpop.f32.mrf.mxu0
    %v962 = vadd.f32 %v893, %v961
    %v963 = vpop.f32.mrf.mxu0
    %964 = vdwg.mxu0
    %965 = vmatprep.subr.mxu0 0.0
    %966 = vmatpush1.xpose.msra.mxu0 0.0
    %967 = vmatprep.subr.mxu0 0.0
    %968 = vmatpush1.xpose.msra.mxu0 0.0
    %969 = vmatprep.subr.mxu0 0.0
    %970 = vmatpush1.xpose.msra.mxu0 0.0
    %971 = vmatprep.subr.mxu0 0.0
    %972 = vmatpush1.xpose.msra.mxu0 0.0
    %973 = vmatprep.subr.mxu0 0.0
    %974 = vmatpush1.xpose.msra.mxu0 0.0
    %975 = vmatprep.subr.mxu0 0.0
    %976 = vmatpush1.xpose.msra.mxu0 0.0
    %977 = vmatprep.subr.mxu0 0.0
    %978 = vmatpush1.xpose.msra.mxu0 0.0
    %979 = vmatprep.subr.mxu0 0.0
    %980 = vmatpush1.xpose.msra.mxu0 0.0
    %981 = vmatprep.subr.mxu0 0.0
    %982 = vmatpush1.xpose.msra.mxu0 0.0
    %983 = vmatprep.subr.mxu0 0.0
    %984 = vmatpush1.xpose.msra.mxu0 0.0
    %985 = vmatprep.subr.mxu0 0.0
    %986 = vmatpush1.xpose.msra.mxu0 0.0
    %987 = vmatprep.subr.mxu0 0.0
    %988 = vmatpush1.xpose.msra.mxu0 0.0
    %989 = vmatprep.subr.mxu0 0.0
    %990 = vmatpush1.xpose.msra.mxu0 0.0
    %991 = vmatprep.subr.mxu0 0.0
    %992 = vmatpush1.xpose.msra.mxu0 0.0
    %993 = vmatprep.subr.mxu0 0.0
    %994 = vmatpush1.xpose.msra.mxu0 %v139
    %995 = vmatprep.subr.mxu0 0.0
    %996 = vmatpush1.xpose.msra.mxu0 %v138
    %997 = vmatprep.subr.mxu0 0.0
    %998 = vmatpush2.xpose.msra.mxu0 0.0
    %999 = vmatprep.subr.mxu0 0.0
    %1000 = vmatpush2.xpose.msra.mxu0 0.0
    %1001 = vmatprep.subr.mxu0 0.0
    %1002 = vmatpush2.xpose.msra.mxu0 0.0
    %1003 = vmatprep.subr.mxu0 0.0
    %1004 = vmatpush2.xpose.msra.mxu0 0.0
    %1005 = vmatprep.subr.mxu0 0.0
    %1006 = vmatpush2.xpose.msra.mxu0 0.0
    %1007 = vmatprep.subr.mxu0 0.0
    %1008 = vmatpush2.xpose.msra.mxu0 0.0
    %1009 = vmatprep.subr.mxu0 0.0
    %1010 = vmatpush2.xpose.msra.mxu0 0.0
    %1011 = vmatprep.subr.mxu0 0.0
    %1012 = vmatpush2.xpose.msra.mxu0 0.0
    %1013 = vmatprep.subr.mxu0 0.0
    %1014 = vmatpush2.xpose.msra.mxu0 0.0
    %1015 = vmatprep.subr.mxu0 0.0
    %1016 = vmatpush2.xpose.msra.mxu0 0.0
    %1017 = vmatprep.subr.mxu0 0.0
    %1018 = vmatpush2.xpose.msra.mxu0 0.0
    %1019 = vmatprep.subr.mxu0 0.0
    %1020 = vmatpush2.xpose.msra.mxu0 0.0
    %1021 = vmatprep.subr.mxu0 0.0
    %1022 = vmatpush2.xpose.msra.mxu0 0.0
    %1023 = vmatprep.subr.mxu0 0.0
    %1024 = vmatpush2.xpose.msra.mxu0 0.0
    %1025 = vmatprep.subr.mxu0 0.0
    %1026 = vmatpush2.xpose.msra.mxu0 0.0
    %1027 = vmatprep.subr.mxu0 0.0
    %1028 = vmatpush2.xpose.msra.mxu0 0.0
    %1029 = vmatprep.mubr.f32.mxu0 0.0
    %1030 = vmatmul.mubr.f32.gmra.mxu0 %v962
    %v1031 = vpop.f32.mrf.mxu0
    %v1032 = vadd.f32 0.0, %v1031
    %v1033 = vpop.f32.mrf.mxu0
    %1034 = vdwg.mxu0
    %v1035 = vmul.f32 %v1032, 2.0
    %v1036 = vsub.f32 %v474, %v1035
    %v1037 = vsel %vm476, %v1036, inf
    %1038 = vmin.xlane.f32.xlu0 %v1037
    %v1039 = vpop.xlane.xlu0 %1038
    %vm1040 = vcmp.le.f32.partialorder %v1036, %v1039
    %v1041 = vsel %vm1040, %v481, 16
    %v1042 = vsel %vm476, %v1041, 2147483647
    %v1043 = vand.u32 %v1042, 65535
    %v1044 = vshra.s32 %v1042, 16
    %v1045 = vcvt.s32.f32 %v1043
    %v1046 = vcvt.s32.f32 %v1044
    %1047 = vmin.xlane.f32.xlu0 %v1046
    %v1048 = vpop.xlane.xlu0 %1047
    %vm1049 = vcmp.eq.f32.partialorder %v1046, %v1048
    %v1050 = vsel %vm1049, %v1045, inf
    %1051 = vmin.xlane.f32.xlu0 %v1050
    %v1052 = vpop.xlane.xlu0 %1051
    %v1053 = vcvt.f32.s32 %v1052
    %v1054 = vcvt.f32.s32 %v1048
    %v1055 = vshll.u32 %v1054, 16
    %v1056 = vadd.s32 %v1055, %v1053
    %vm1057 = vcmp.eq.s32.totalorder %v481, %v1056
    %v1058 = vsel %vm1057, 1, 0
    %v1059 = vcvt.s32.f32 %v1058
    %v1061 = vsel %vm476, %v1059, 0
    %1063 = vmatprep.subr.mxu0 0.0
    %1064 = vmatpush1.msra.mxu0 0.0
    %1065 = vmatprep.subr.mxu0 0.0
    %1066 = vmatpush1.msra.mxu0 0.0
    %1067 = vmatprep.subr.mxu0 0.0
    %1068 = vmatpush1.msra.mxu0 0.0
    %1069 = vmatprep.subr.mxu0 0.0
    %1070 = vmatpush1.msra.mxu0 0.0
    %1071 = vmatprep.subr.mxu0 0.0
    %1072 = vmatpush1.msra.mxu0 0.0
    %1073 = vmatprep.subr.mxu0 0.0
    %1074 = vmatpush1.msra.mxu0 0.0
    %1075 = vmatprep.subr.mxu0 0.0
    %1076 = vmatpush1.msra.mxu0 0.0
    %1077 = vmatprep.subr.mxu0 0.0
    %1078 = vmatpush1.msra.mxu0 0.0
    %1079 = vmatprep.subr.mxu0 0.0
    %1080 = vmatpush1.msra.mxu0 0.0
    %1081 = vmatprep.subr.mxu0 0.0
    %1082 = vmatpush1.msra.mxu0 0.0
    %1083 = vmatprep.subr.mxu0 0.0
    %1084 = vmatpush1.msra.mxu0 0.0
    %1085 = vmatprep.subr.mxu0 0.0
    %1086 = vmatpush1.msra.mxu0 0.0
    %1087 = vmatprep.subr.mxu0 0.0
    %1088 = vmatpush1.msra.mxu0 0.0
    %1089 = vmatprep.subr.mxu0 0.0
    %1090 = vmatpush1.msra.mxu0 0.0
    %1091 = vmatprep.subr.mxu0 0.0
    %1092 = vmatpush1.msra.mxu0 %v139
    %1093 = vmatprep.subr.mxu0 0.0
    %1094 = vmatpush1.msra.mxu0 %v138
    %1095 = vmatprep.subr.mxu0 0.0
    %1096 = vmatpush2.msra.mxu0 0.0
    %1097 = vmatprep.subr.mxu0 0.0
    %1098 = vmatpush2.msra.mxu0 0.0
    %1099 = vmatprep.subr.mxu0 0.0
    %1100 = vmatpush2.msra.mxu0 0.0
    %1101 = vmatprep.subr.mxu0 0.0
    %1102 = vmatpush2.msra.mxu0 0.0
    %1103 = vmatprep.subr.mxu0 0.0
    %1104 = vmatpush2.msra.mxu0 0.0
    %1105 = vmatprep.subr.mxu0 0.0
    %1106 = vmatpush2.msra.mxu0 0.0
    %1107 = vmatprep.subr.mxu0 0.0
    %1108 = vmatpush2.msra.mxu0 0.0
    %1109 = vmatprep.subr.mxu0 0.0
    %1110 = vmatpush2.msra.mxu0 0.0
    %1111 = vmatprep.subr.mxu0 0.0
    %1112 = vmatpush2.msra.mxu0 0.0
    %1113 = vmatprep.subr.mxu0 0.0
    %1114 = vmatpush2.msra.mxu0 0.0
    %1115 = vmatprep.subr.mxu0 0.0
    %1116 = vmatpush2.msra.mxu0 0.0
    %1117 = vmatprep.subr.mxu0 0.0
    %1118 = vmatpush2.msra.mxu0 0.0
    %1119 = vmatprep.subr.mxu0 0.0
    %1120 = vmatpush2.msra.mxu0 0.0
    %1121 = vmatprep.subr.mxu0 0.0
    %1122 = vmatpush2.msra.mxu0 0.0
    %1123 = vmatprep.subr.mxu0 0.0
    %1124 = vmatpush2.msra.mxu0 0.0
    %1125 = vmatprep.subr.mxu0 0.0
    %1126 = vmatpush2.msra.mxu0 0.0
    %1127 = vmatprep.mubr.f32.mxu0 0.0
    %1128 = vmatmul.mubr.f32.gmra.mxu0 %v1061
    %v1129 = vpop.f32.mrf.mxu0
    %v1130 = vadd.f32 0.0, %v1129
    %v1131 = vpop.f32.mrf.mxu0
    %1132 = vdwg.mxu0
    %1133 = vst [vmem:[#allocation15] sm:$0xff] %v1130
    // Predicated region
    $region86: #{bgrl_forward.1} parent=1 // pred_check
      _
    $region87: #{bgrl_forward.1} parent=1 // pred_check_branch
      %1135 = sbr.rel (0) target = $region89
    $region88: #{bgrl_forward.1} parent=1 // pred_region
      %s1137 = ssub.s32 128, 128
      %1138 = vsyncadd [#allocation4], %s1137
      %s1140 = sshll.u32 [#allocation14], 4
      %s1141 = int_to_ptr.vmem [resolvable:$true] %s1140
      %1143 = dma.vmem_to_hbm [thread:$0]  %s1141, 128, %s15, [#allocation4]
    $region89: #{bgrl_forward.1} parent=1 // pred_fallthru
      _
    // Predicated region
    $region90: #{bgrl_forward.1} parent=1 // pred_check
      _
    $region91: #{bgrl_forward.1} parent=1 // pred_check_branch
      %1145 = sbr.rel (0) target = $region93
    $region92: #{bgrl_forward.1} parent=1 // pred_region
      %s1147 = ssub.s32 128, 128
      %1148 = vsyncadd [#allocation16], %s1147
      %s1150 = sshll.u32 [#allocation15], 4
      %s1151 = int_to_ptr.vmem [resolvable:$true] %s1150
      %1153 = dma.vmem_to_hbm [thread:$0]  %s1151, 128, %s16, [#allocation16]
    $region93: #{bgrl_forward.1} parent=1 // pred_fallthru
      _
    // Predicated region
    $region94: #{bgrl_forward.1} parent=1 // pred_check
      _
    $region95: #{bgrl_forward.1} parent=1 // pred_check_branch
      %1155 = sbr.rel (0) target = $region97
    $region96: #{bgrl_forward.1} parent=1 // pred_region
      %s1157 = ssub.s32 16, 16
      %1158 = vsyncadd [#allocation5], %s1157
      %1161 = dma.smem_to_hbm [#allocation17], 16, %s17, [#allocation5]
    $region97: #{bgrl_forward.1} parent=1 // pred_fallthru
      _
    // Predicated region
    $region98: #{bgrl_forward.1} parent=1 // pred_check
      _
    $region99: #{bgrl_forward.1} parent=1 // pred_check_branch
      %1163 = sbr.rel (0) target = $region101
    $region100: #{bgrl_forward.1} parent=1 // pred_region
      %1164 = dma.done [#allocation4], 128
    $region101: #{bgrl_forward.1} parent=1 // pred_fallthru
      _
    // Predicated region
    $region102: #{bgrl_forward.1} parent=1 // pred_check
      _
    $region103: #{bgrl_forward.1} parent=1 // pred_check_branch
      %1166 = sbr.rel (0) target = $region105
    $region104: #{bgrl_forward.1} parent=1 // pred_region
      %1167 = dma.done [#allocation16], 128
    $region105: #{bgrl_forward.1} parent=1 // pred_fallthru
      _
    // Predicated region
    $region106: #{bgrl_forward.1} parent=1 // pred_check
      _
    $region107: #{bgrl_forward.1} parent=1 // pred_check_branch
      %1169 = sbr.rel (0) target = $region109
    $region108: #{bgrl_forward.1} parent=1 // pred_region
      %1170 = dma.done [#allocation5], 16
    $region109: #{bgrl_forward.1} parent=1 // pred_fallthru
      _
    %1171 = sfence
    %1172 = vsyncpa [#allocation3], 1
    %1173 = vsyncpa [#allocation7], 1
    %1174 = vsyncpa [#allocation10], 1
    %1175 = vsyncpa [#allocation13], 1
    %1176 = vsyncpa [#allocation4], 1
    %1177 = vsyncpa [#allocation16], 1
    %1178 = vsyncpa [#allocation5], 1

</llo_original>
